<compile_context>
chip_gen: v7x
topology: tpu7x:2x2x1
jax: 0.10.0
libtpu: 0.0.40
codegen_flags: <defaults>
</compile_context>

<pallas_src>
import functools

import jax
import jax.numpy as jnp
from jax.experimental import pallas as pl
from jax.experimental.pallas import tpu as pltpu

D_IN = 28 * 28   # 784
H1 = 400
H2 = 128
_LANE = 128
_SUBLANE = 8


def _round_up(n, m):
    return (n + m - 1) // m * m


def _encoder_kernel(
    x_ref,            # (TB, 784)  f32  (cast to bf16 in-kernel)
    w1_ref, b1_ref,   # (784, 512) bf16, (1, 512) f32
    w2_ref, b2_ref,   # (512, 128) bf16, (1, 128) f32
    wh_ref, bh_ref,   # (128, Hp)  bf16, (1, Hp)  f32   (fused mu|log_var heads)
    out_ref,          # (TB, Hp)         ([:, :L]=mu, [:, L:2L]=log_var)
):
    # f32 -> bf16 on the VPU inside the kernel (no separate XLA pass over x).
    x = x_ref[...].astype(w1_ref.dtype)

    # fc1 + ReLU: bf16 MXU matmul, f32 accumulate, f32 bias/ReLU on the VPU.
    h1 = jnp.dot(x, w1_ref[...], preferred_element_type=jnp.float32) + b1_ref[...]
    h1 = jnp.maximum(h1, 0.0).astype(w2_ref.dtype)

    # fc2 + ReLU
    h2 = jnp.dot(h1, w2_ref[...], preferred_element_type=jnp.float32) + b2_ref[...]
    h2 = jnp.maximum(h2, 0.0).astype(wh_ref.dtype)

    # fused mu / log_var heads -> single lane-dense output store.
    out = jnp.dot(h2, wh_ref[...], preferred_element_type=jnp.float32) + bh_ref[...]
    out_ref[...] = out.astype(out_ref.dtype)


def prepare_params(params, compute_dtype=jnp.bfloat16):
    """Pad output feature dims to multiples of 128, fuse the two heads, cast to bf16.

    Zero padding is exact: padded h1 columns are relu(0)=0 and their fc2 rows
    are 0; padded head columns are sliced off in the wrapper. W1 keeps its 784
    K rows (no 896 pad) — the x block uses the full-array-dim exemption and
    Mosaic pads K internally, so we don't pay extra HBM bytes on the x stream.
    """
    w1, b1 = params["w1"], params["b1"]          # (784, 400), (1, 400)
    w2, b2 = params["w2"], params["b2"]          # (400, 128), (1, 128)
    wmu, bmu = params["w_mu"], params["b_mu"]    # (128, L),   (1, L)
    wlv, blv = params["w_lv"], params["b_lv"]    # (128, L),   (1, L)
    latent = wmu.shape[1]

    h1_p = _round_up(H1, _LANE)          # 512
    h2_p = _round_up(H2, _LANE)          # 128
    heads_p = _round_up(2 * latent, _LANE)

    w1_p = jnp.zeros((D_IN, h1_p), jnp.float32).at[:, :H1].set(w1)
    b1_p = jnp.zeros((1, h1_p), jnp.float32).at[:, :H1].set(b1)
    w2_p = jnp.zeros((h1_p, h2_p), jnp.float32).at[:H1, :H2].set(w2)
    b2_p = jnp.zeros((1, h2_p), jnp.float32).at[:, :H2].set(b2)

    wh = jnp.concatenate([wmu, wlv], axis=1)     # (128, 2L)
    bh = jnp.concatenate([bmu, blv], axis=1)     # (1, 2L)
    wh_p = jnp.zeros((h2_p, heads_p), jnp.float32).at[:H2, : 2 * latent].set(wh)
    bh_p = jnp.zeros((1, heads_p), jnp.float32).at[:, : 2 * latent].set(bh)

    return {
        "w1": w1_p.astype(compute_dtype), "b1": b1_p,
        "w2": w2_p.astype(compute_dtype), "b2": b2_p,
        "w_heads": wh_p.astype(compute_dtype), "b_heads": bh_p,
    }


@functools.partial(jax.jit, static_argnames=("latent_dim", "tile_b", "out_dtype"))
def encoder_ln_forward(x, prepared, latent_dim, *, tile_b=1024, out_dtype=jnp.float32):
    """x: [B, 784] float32. prepared: output of prepare_params()."""
    B, D = x.shape
    assert D == D_IN

    w1, b1 = prepared["w1"], prepared["b1"]
    w2, b2 = prepared["w2"], prepared["b2"]
    wh, bh = prepared["w_heads"], prepared["b_heads"]
    h1_p = w1.shape[1]
    h2_p = w2.shape[1]
    heads_p = wh.shape[1]

    # Batch tile: large by default (amortizes grid-step overhead, fills the
    # MXU M dim), capped for tiny batches, multiple of 8 sublanes. ~15 MiB
    # live at tile_b=1024 incl. double buffers -> safe on v7x's 64 MiB VMEM;
    # on v5e/v6e (128 MiB) tile_b=2048-4096 is also fine.
    tile_b = min(tile_b, _round_up(B, _SUBLANE))
    # v7x: guarantee >=2 grid steps so the parallel axis can shard across both
    # TensorCores even when the whole batch fits in one tile.
    if pl.cdiv(B, tile_b) < 2 and B > _SUBLANE:
        tile_b = max(_SUBLANE, _round_up(pl.cdiv(B, 2), _SUBLANE))
    assert tile_b % _SUBLANE == 0
    grid = (pl.cdiv(B, tile_b),)

    # No wrapper-side pad/cast of x. The last (possibly partial) batch tile is
    # handled by Pallas: OOB reads only feed output rows that are dropped.

    # Grid-invariant weights/biases: single pipeline buffer (block index never
    # changes, so a second buffer is wasted VMEM / DMA descriptors).
    resident = lambda arr: pl.BlockSpec(
        arr.shape, lambda i: (0, 0), pipeline_mode=pl.Buffered(1))

    grid_spec = pltpu.PrefetchScalarGridSpec(
        num_scalar_prefetch=0,
        grid=grid,
        in_specs=[
            pl.BlockSpec((tile_b, D_IN), lambda i: (i, 0)),   # x batch tile (f32)
            resident(w1), resident(b1),
            resident(w2), resident(b2),
            resident(wh), resident(bh),
        ],
        out_specs=pl.BlockSpec((tile_b, heads_p), lambda i: (i, 0)),
    )

    flops = 2 * B * (D_IN * h1_p + h1_p * h2_p + h2_p * heads_p)
    bytes_accessed = (
        B * D_IN * 4                                            # x (f32)
        + (D_IN * h1_p + h1_p * h2_p + h2_p * heads_p) * 2      # bf16 weights
        + (h1_p + h2_p + heads_p) * 4                           # f32 biases
        + B * heads_p * jnp.dtype(out_dtype).itemsize           # fused output
    )

    out = pl.pallas_call(
        _encoder_kernel,
        out_shape=jax.ShapeDtypeStruct((B, heads_p), out_dtype),
        grid_spec=grid_spec,
        compiler_params=pltpu.CompilerParams(
            dimension_semantics=("parallel",),
            vmem_limit_bytes=48 * 1024 * 1024,
        ),
        cost_estimate=pl.CostEstimate(
            flops=flops, transcendentals=0, bytes_accessed=bytes_accessed),
    )(x, w1, b1, w2, b2, wh, bh)

    mu = out[:, :latent_dim]
    log_var = out[:, latent_dim:2 * latent_dim]
    return mu, log_var


def init_params(key, latent_dim):
    """nn.Linear-style init U(-1/sqrt(fan_in), 1/sqrt(fan_in)); weights stored [in, out]."""
    def linear(k, fan_in, fan_out):
        kw, kb = jax.random.split(k)
        bound = 1.0 / jnp.sqrt(fan_in)
        w = jax.random.uniform(kw, (fan_in, fan_out), jnp.float32, -bound, bound)
        b = jax.random.uniform(kb, (1, fan_out), jnp.float32, -bound, bound)
        return w, b

    k1, k2, k3, k4 = jax.random.split(key, 4)
    w1, b1 = linear(k1, D_IN, H1)
    w2, b2 = linear(k2, H1, H2)
    wmu, bmu = linear(k3, H2, latent_dim)
    wlv, blv = linear(k4, H2, latent_dim)
    return {
        "w1": w1, "b1": b1,
        "w2": w2, "b2": b2,
        "w_mu": wmu, "b_mu": bmu,
        "w_lv": wlv, "b_lv": blv,
    }


def reference_forward(x, params):
    """Pure-JAX f32 reference of Encoder_LN.forward."""
    h1 = jnp.maximum(x @ params["w1"] + params["b1"], 0.0)
    h2 = jnp.maximum(h1 @ params["w2"] + params["b2"], 0.0)
    mu = h2 @ params["w_mu"] + params["b_mu"]
    log_var = h2 @ params["w_lv"] + params["b_lv"]
    return mu, log_var


if __name__ == "__main__":
    latent_dim = 32
    batch = 20     # not a multiple of 8/tile -> exercises the partial last block

    key = jax.random.PRNGKey(0)
    k_params, k_x = jax.random.split(key)

    params = init_params(k_params, latent_dim)
    prepared = prepare_params(params)
    x = jax.random.normal(k_x, (batch, D_IN), jnp.float32)

    # Default tile_b=1024 auto-caps to 24 and then auto-splits to 16 so the
    # grid has 2 steps -> both v7x TensorCores get a tile even at this batch.
    mu, log_var = encoder_ln_forward(x, prepared, latent_dim)
    jax.block_until_ready((mu, log_var))

    mu_ref, lv_ref = reference_forward(x, params)
    assert mu.shape == (batch, latent_dim) and log_var.shape == (batch, latent_dim)
    # bf16 MXU inputs -> looser tolerance vs the f32 reference.
    assert jnp.allclose(mu, mu_ref, atol=2e-2, rtol=2e-2), float(jnp.abs(mu - mu_ref).max())
    assert jnp.allclose(log_var, lv_ref, atol=2e-2, rtol=2e-2), float(jnp.abs(log_var - lv_ref).max())

    print("KERNEL_OK")
</pallas_src>

<mosaic_0001>
module attributes {stable_mosaic.version = 11 : i64} {
  func.func @_encoder_kernel(%arg0: i32, %arg1: memref<16x784xf32, #tpu.memory_space<vmem>>, %arg2: memref<784x512xbf16, #tpu.memory_space<vmem>>, %arg3: memref<1x512xf32, #tpu.memory_space<vmem>>, %arg4: memref<512x128xbf16, #tpu.memory_space<vmem>>, %arg5: memref<1x128xf32, #tpu.memory_space<vmem>>, %arg6: memref<128x128xbf16, #tpu.memory_space<vmem>>, %arg7: memref<1x128xf32, #tpu.memory_space<vmem>>, %arg8: memref<16x128xf32, #tpu.memory_space<vmem>>) attributes {dimension_semantics = [#tpu.dimension_semantics<parallel>], iteration_bounds = array<i64: 2>, scalar_prefetch = 0 : i64, scratch_operands = 0 : i64, tpu.core_type = #tpu.core_type<tc>, window_params = [{transform_indices = @transform_0, window_bounds = array<i64: 16, 784>}, {pipeline_mode = #tpu.pipeline_mode<synchronous>, transform_indices = @transform_1, window_bounds = array<i64: 784, 512>}, {pipeline_mode = #tpu.pipeline_mode<synchronous>, transform_indices = @transform_2, window_bounds = array<i64: 1, 512>}, {pipeline_mode = #tpu.pipeline_mode<synchronous>, transform_indices = @transform_3, window_bounds = array<i64: 512, 128>}, {pipeline_mode = #tpu.pipeline_mode<synchronous>, transform_indices = @transform_4, window_bounds = array<i64: 1, 128>}, {pipeline_mode = #tpu.pipeline_mode<synchronous>, transform_indices = @transform_5, window_bounds = array<i64: 128, 128>}, {pipeline_mode = #tpu.pipeline_mode<synchronous>, transform_indices = @transform_6, window_bounds = array<i64: 1, 128>}, {transform_indices = @transform_7, window_bounds = array<i64: 16, 128>}]} {
    %c0 = arith.constant 0 : index
    %c0_0 = arith.constant 0 : index
    %0 = vector.load %arg1[%c0, %c0_0] : memref<16x784xf32, #tpu.memory_space<vmem>>, vector<16x784xf32>
    %1 = arith.truncf %0 : vector<16x784xf32> to vector<16x784xbf16>
    %c0_1 = arith.constant 0 : index
    %c0_2 = arith.constant 0 : index
    %2 = vector.load %arg2[%c0_1, %c0_2] : memref<784x512xbf16, #tpu.memory_space<vmem>>, vector<784x512xbf16>
    %cst = arith.constant dense<0.000000e+00> : vector<16x512xf32>
    %3 = tpu.matmul %1, %2, %cst {dimension_numbers = #tpu.dot_dimension_numbers<[1], [0], [0], [1], [0, 0, 1, 1], [], []>} : vector<16x784xbf16>, vector<784x512xbf16>, vector<16x512xf32> -> vector<16x512xf32>
    %c0_3 = arith.constant 0 : index
    %c0_4 = arith.constant 0 : index
    %4 = vector.load %arg3[%c0_3, %c0_4] : memref<1x512xf32, #tpu.memory_space<vmem>>, vector<1x512xf32>
    %5 = vector.broadcast %4 : vector<1x512xf32> to vector<16x512xf32>
    %6 = arith.addf %3, %5 : vector<16x512xf32>
    %cst_5 = arith.constant 0.000000e+00 : f32
    %7 = vector.broadcast %cst_5 : f32 to vector<16x512xf32>
    %8 = arith.maximumf %6, %7 : vector<16x512xf32>
    %9 = arith.truncf %8 : vector<16x512xf32> to vector<16x512xbf16>
    %c0_6 = arith.constant 0 : index
    %c0_7 = arith.constant 0 : index
    %10 = vector.load %arg4[%c0_6, %c0_7] : memref<512x128xbf16, #tpu.memory_space<vmem>>, vector<512x128xbf16>
    %cst_8 = arith.constant dense<0.000000e+00> : vector<16x128xf32>
    %11 = tpu.matmul %9, %10, %cst_8 {dimension_numbers = #tpu.dot_dimension_numbers<[1], [0], [0], [1], [0, 0, 1, 1], [], []>} : vector<16x512xbf16>, vector<512x128xbf16>, vector<16x128xf32> -> vector<16x128xf32>
    %c0_9 = arith.constant 0 : index
    %c0_10 = arith.constant 0 : index
    %12 = vector.load %arg5[%c0_9, %c0_10] : memref<1x128xf32, #tpu.memory_space<vmem>>, vector<1x128xf32>
    %13 = vector.broadcast %12 : vector<1x128xf32> to vector<16x128xf32>
    %14 = arith.addf %11, %13 : vector<16x128xf32>
    %cst_11 = arith.constant 0.000000e+00 : f32
    %15 = vector.broadcast %cst_11 : f32 to vector<16x128xf32>
    %16 = arith.maximumf %14, %15 : vector<16x128xf32>
    %17 = arith.truncf %16 : vector<16x128xf32> to vector<16x128xbf16>
    %c0_12 = arith.constant 0 : index
    %c0_13 = arith.constant 0 : index
    %18 = vector.load %arg6[%c0_12, %c0_13] : memref<128x128xbf16, #tpu.memory_space<vmem>>, vector<128x128xbf16>
    %cst_14 = arith.constant dense<0.000000e+00> : vector<16x128xf32>
    %19 = tpu.matmul %17, %18, %cst_14 {dimension_numbers = #tpu.dot_dimension_numbers<[1], [0], [0], [1], [0, 0, 1, 1], [], []>} : vector<16x128xbf16>, vector<128x128xbf16>, vector<16x128xf32> -> vector<16x128xf32>
    %c0_15 = arith.constant 0 : index
    %c0_16 = arith.constant 0 : index
    %20 = vector.load %arg7[%c0_15, %c0_16] : memref<1x128xf32, #tpu.memory_space<vmem>>, vector<1x128xf32>
    %21 = vector.broadcast %20 : vector<1x128xf32> to vector<16x128xf32>
    %22 = arith.addf %19, %21 : vector<16x128xf32>
    %c0_17 = arith.constant 0 : index
    %c0_18 = arith.constant 0 : index
    %23 = vector.load %arg8[%c0_17, %c0_18] : memref<16x128xf32, #tpu.memory_space<vmem>>, vector<16x128xf32>
    tpu.vector_store %arg8[%c0_17, %c0_18], %22 {strides = array<i32>} : memref<16x128xf32, #tpu.memory_space<vmem>>, vector<16x128xf32>,
    return
  }
  func.func @transform_0(%arg0: i32) -> (i32, i32) {
    %c0_i32 = arith.constant 0 : i32
    %c0_i32_0 = arith.constant 0 : i32
    return %arg0, %c0_i32 : i32, i32
  }
  func.func @transform_1(%arg0: i32) -> (i32, i32) {
    %c0_i32 = arith.constant 0 : i32
    %c0_i32_0 = arith.constant 0 : i32
    %c0_i32_1 = arith.constant 0 : i32
    return %c0_i32, %c0_i32_0 : i32, i32
  }
  func.func @transform_2(%arg0: i32) -> (i32, i32) {
    %c0_i32 = arith.constant 0 : i32
    %c0_i32_0 = arith.constant 0 : i32
    %c0_i32_1 = arith.constant 0 : i32
    return %c0_i32, %c0_i32_0 : i32, i32
  }
  func.func @transform_3(%arg0: i32) -> (i32, i32) {
    %c0_i32 = arith.constant 0 : i32
    %c0_i32_0 = arith.constant 0 : i32
    %c0_i32_1 = arith.constant 0 : i32
    return %c0_i32, %c0_i32_0 : i32, i32
  }
  func.func @transform_4(%arg0: i32) -> (i32, i32) {
    %c0_i32 = arith.constant 0 : i32
    %c0_i32_0 = arith.constant 0 : i32
    %c0_i32_1 = arith.constant 0 : i32
    return %c0_i32, %c0_i32_0 : i32, i32
  }
  func.func @transform_5(%arg0: i32) -> (i32, i32) {
    %c0_i32 = arith.constant 0 : i32
    %c0_i32_0 = arith.constant 0 : i32
    %c0_i32_1 = arith.constant 0 : i32
    return %c0_i32, %c0_i32_0 : i32, i32
  }
  func.func @transform_6(%arg0: i32) -> (i32, i32) {
    %c0_i32 = arith.constant 0 : i32
    %c0_i32_0 = arith.constant 0 : i32
    %c0_i32_1 = arith.constant 0 : i32
    return %c0_i32, %c0_i32_0 : i32, i32
  }
  func.func @transform_7(%arg0: i32) -> (i32, i32) {
    %c0_i32 = arith.constant 0 : i32
    %c0_i32_0 = arith.constant 0 : i32
    return %arg0, %c0_i32 : i32, i32
  }
}

</mosaic_0001>

<llo_original>
// kernel: encoder_ln_forward.1
$region0: #{encoder_ln_forward.1}
  #allocation0 [shape = 'u32[]', space=smem, size = 0x4, offset = 0x4, fixed_abs, tag = 'smem constant byte address 0x4 - core index']
  #allocation1 [shape = 'u32[144,128]{1,0:T(1,128)}', space=vmem, size = 0x12000, scoped, tag = 'internal scratch']
  %s0 = inlined_call_operand.hbm [shape: f32[20,784], index: 0, kind: input, shape index: {}]
  %s1 = inlined_call_operand.hbm [shape: bf16[784,512], index: 1, kind: input, shape index: {}]
  %s2 = inlined_call_operand.hbm [shape: f32[1,512], index: 2, kind: input, shape index: {}]
  %s3 = inlined_call_operand.hbm [shape: bf16[512,128], index: 3, kind: input, shape index: {}]
  %s4 = inlined_call_operand.vmem [shape: f32[1,128], index: 4, kind: input, shape index: {}]
  %s5 = inlined_call_operand.hbm [shape: bf16[128,128], index: 5, kind: input, shape index: {}]
  %s6 = inlined_call_operand.vmem [shape: f32[1,128], index: 6, kind: input, shape index: {}]
  %s7 = inlined_call_operand.vmem [shape: f32[20,128], index: 7, kind: output, shape index: {}]
  %s8 = sld [smem:[#allocation0]]
  $region129: #{encoder_ln_forward.1} parent=0
    _
  %s10 = ssub.s32 1, %s8
  %s11 = scalar_select 0, %s10, %s8
  $region1: #{encoder_ln_forward.1} parent=0
    #allocation2 [shape = 'u8[114688]{0}', space=vmem, size = 0x1c000, scoped, tag = 'input window, operand 0']
    #allocation3 [shape = 's32[2]{0}', space=sflag, size = 0x8, scoped, tag = 'scoped memory for encoder_ln_forward.1']
    #allocation4 [shape = 'u8[802816]{0}', space=vmem, size = 0xc4000, scoped, tag = 'input window, operand 1, single buffered']
    #allocation5 [shape = 's32[1]{0}', space=sflag, size = 0x4, scoped, tag = 'scoped memory for encoder_ln_forward.1']
    #allocation6 [shape = 'u8[2048]{0}', space=vmem, size = 0x800, scoped, tag = 'input window, operand 2, single buffered']
    #allocation7 [shape = 'u8[131072]{0}', space=vmem, size = 0x20000, scoped, tag = 'input window, operand 3, single buffered']
    #allocation8 [shape = 's32[1]{0}', space=sflag, size = 0x4, scoped, tag = 'scoped memory for encoder_ln_forward.1']
    #allocation9 [shape = 'u8[32768]{0}', space=vmem, size = 0x8000, scoped, tag = 'input window, operand 5, single buffered']
    #allocation10 [shape = 'u8[16384]{0}', space=vmem, size = 0x4000, scoped, tag = 'output window, operand 0']
    %12 = vsyncpa [#allocation3], 0
    %s13 = scalar_lea.sflag [#allocation3], 1
    %14 = vsyncpa %s13, 0
    %15 = vsyncpa [#allocation5], 0
    %16 = vsyncpa [#allocation8], 0
    loop: start=0, step=1, limit=4
    $region2: #{encoder_ln_forward.1} parent=1 // loop_pre_header
      _
    $region3: #{encoder_ln_forward.1} parent=1 // loop_header
      %s18 = sphi 0, %s22
      %p19 = scmp.ge.s32.totalorder %s18, 4
      %s28 = sphi 0, %s30
      %s31 = sphi 0, %s28
      %s32 = sphi 0, %s31
      %s48 = sphi 0, %s32
      %s52 = sphi 0, %s52
      %s54 = sphi 0, %s52
      %s55 = sphi 0, %s54
      %s69 = sphi 0, %s55
      %s73 = sphi 0, %s73
      %s75 = sphi 0, %s73
      %s76 = sphi 0, %s75
      %s90 = sphi 0, %s76
      %s94 = sphi 0, %s94
      %s96 = sphi 0, %s94
      %s97 = sphi 0, %s96
      %s111 = sphi 0, %s97
      %s115 = sphi 0, %s115
      %s117 = sphi 0, %s115
      %s118 = sphi 0, %s117
      %s132 = sphi 0, %s118
      %s136 = sphi 0, %s136
      %s138 = sphi 0, %s136
      %s139 = sphi 0, %s138
      %s153 = sphi 0, %s139
      %s157 = sphi 0, %s157
      %s159 = sphi 0, %s157
      %s160 = sphi 0, %s159
      %s174 = sphi 0, %s160
      %s180 = sphi 0, %s182
      %s183 = sphi 0, %s180
      %s184 = sphi 0, %s183
      %s200 = sphi 0, %s184
    $region4: #{encoder_ln_forward.1} parent=1 // loop_header_branch
      %21 = sbr.rel (%p19) target = $region8
    $region5: #{encoder_ln_forward.1} parent=1 // loop_body
      %s23 = ssub.s32 %s18, 1
      %s24 = ssub.s32 %s18, 2
      %s25 = sadd.s32 %s18, 1
      %s26 = ssub.s32 %s18, %s25
      %p27 = scmp.eq.s32.totalorder %s26, 0
      %s29 = sadd.s32 %s28, 1
      %s30 = scalar_select %p27, %s28, %s29
      %p33 = pneg %p27
      %p34 = scmp.eq.s32.totalorder %s18, 1
      %p35 = por %p33, %p34
      %p36 = scmp.ne.s32.totalorder %s28, %s31
      %p37 = scmp.eq.s32.totalorder %s18, 0
      %p38 = por %p36, %p37
      %p39 = scmp.ne.s32.totalorder %s28, %s31
      %p40 = scmp.eq.s32.totalorder %s23, 1
      %p41 = por %p39, %p40
      %p42 = scmp.ne.s32.totalorder %s31, %s32
      %p43 = scmp.eq.s32.totalorder %s23, 0
      %p44 = por %p42, %p43
      %p45 = scmp.ne.s32.totalorder %s31, %s32
      %p46 = scmp.eq.s32.totalorder %s24, 1
      %p47 = por %p45, %p46
      %p49 = scmp.ne.s32.totalorder %s32, %s48
      %p50 = scmp.eq.s32.totalorder %s24, 0
      %p51 = por %p49, %p50
      %s53 = sadd.s32 %s52, 1
      %p56 = scmp.eq.s32.totalorder %s18, 1
      %p57 = scmp.ne.s32.totalorder %s52, %s54
      %p58 = scmp.eq.s32.totalorder %s18, 0
      %p59 = por %p57, %p58
      %p60 = scmp.ne.s32.totalorder %s52, %s54
      %p61 = scmp.eq.s32.totalorder %s23, 1
      %p62 = por %p60, %p61
      %p63 = scmp.ne.s32.totalorder %s54, %s55
      %p64 = scmp.eq.s32.totalorder %s23, 0
      %p65 = por %p63, %p64
      %p66 = scmp.ne.s32.totalorder %s54, %s55
      %p67 = scmp.eq.s32.totalorder %s24, 1
      %p68 = por %p66, %p67
      %p70 = scmp.ne.s32.totalorder %s55, %s69
      %p71 = scmp.eq.s32.totalorder %s24, 0
      %p72 = por %p70, %p71
      %s74 = sadd.s32 %s73, 1
      %p77 = scmp.eq.s32.totalorder %s18, 1
      %p78 = scmp.ne.s32.totalorder %s73, %s75
      %p79 = scmp.eq.s32.totalorder %s18, 0
      %p80 = por %p78, %p79
      %p81 = scmp.ne.s32.totalorder %s73, %s75
      %p82 = scmp.eq.s32.totalorder %s23, 1
      %p83 = por %p81, %p82
      %p84 = scmp.ne.s32.totalorder %s75, %s76
      %p85 = scmp.eq.s32.totalorder %s23, 0
      %p86 = por %p84, %p85
      %p87 = scmp.ne.s32.totalorder %s75, %s76
      %p88 = scmp.eq.s32.totalorder %s24, 1
      %p89 = por %p87, %p88
      %p91 = scmp.ne.s32.totalorder %s76, %s90
      %p92 = scmp.eq.s32.totalorder %s24, 0
      %p93 = por %p91, %p92
      %s95 = sadd.s32 %s94, 1
      %p98 = scmp.eq.s32.totalorder %s18, 1
      %p99 = scmp.ne.s32.totalorder %s94, %s96
      %p100 = scmp.eq.s32.totalorder %s18, 0
      %p101 = por %p99, %p100
      %p102 = scmp.ne.s32.totalorder %s94, %s96
      %p103 = scmp.eq.s32.totalorder %s23, 1
      %p104 = por %p102, %p103
      %p105 = scmp.ne.s32.totalorder %s96, %s97
      %p106 = scmp.eq.s32.totalorder %s23, 0
      %p107 = por %p105, %p106
      %p108 = scmp.ne.s32.totalorder %s96, %s97
      %p109 = scmp.eq.s32.totalorder %s24, 1
      %p110 = por %p108, %p109
      %p112 = scmp.ne.s32.totalorder %s97, %s111
      %p113 = scmp.eq.s32.totalorder %s24, 0
      %p114 = por %p112, %p113
      %s116 = sadd.s32 %s115, 1
      %p119 = scmp.eq.s32.totalorder %s18, 1
      %p120 = scmp.ne.s32.totalorder %s115, %s117
      %p121 = scmp.eq.s32.totalorder %s18, 0
      %p122 = por %p120, %p121
      %p123 = scmp.ne.s32.totalorder %s115, %s117
      %p124 = scmp.eq.s32.totalorder %s23, 1
      %p125 = por %p123, %p124
      %p126 = scmp.ne.s32.totalorder %s117, %s118
      %p127 = scmp.eq.s32.totalorder %s23, 0
      %p128 = por %p126, %p127
      %p129 = scmp.ne.s32.totalorder %s117, %s118
      %p130 = scmp.eq.s32.totalorder %s24, 1
      %p131 = por %p129, %p130
      %p133 = scmp.ne.s32.totalorder %s118, %s132
      %p134 = scmp.eq.s32.totalorder %s24, 0
      %p135 = por %p133, %p134
      %s137 = sadd.s32 %s136, 1
      %p140 = scmp.eq.s32.totalorder %s18, 1
      %p141 = scmp.ne.s32.totalorder %s136, %s138
      %p142 = scmp.eq.s32.totalorder %s18, 0
      %p143 = por %p141, %p142
      %p144 = scmp.ne.s32.totalorder %s136, %s138
      %p145 = scmp.eq.s32.totalorder %s23, 1
      %p146 = por %p144, %p145
      %p147 = scmp.ne.s32.totalorder %s138, %s139
      %p148 = scmp.eq.s32.totalorder %s23, 0
      %p149 = por %p147, %p148
      %p150 = scmp.ne.s32.totalorder %s138, %s139
      %p151 = scmp.eq.s32.totalorder %s24, 1
      %p152 = por %p150, %p151
      %p154 = scmp.ne.s32.totalorder %s139, %s153
      %p155 = scmp.eq.s32.totalorder %s24, 0
      %p156 = por %p154, %p155
      %s158 = sadd.s32 %s157, 1
      %p161 = scmp.eq.s32.totalorder %s18, 1
      %p162 = scmp.ne.s32.totalorder %s157, %s159
      %p163 = scmp.eq.s32.totalorder %s18, 0
      %p164 = por %p162, %p163
      %p165 = scmp.ne.s32.totalorder %s157, %s159
      %p166 = scmp.eq.s32.totalorder %s23, 1
      %p167 = por %p165, %p166
      %p168 = scmp.ne.s32.totalorder %s159, %s160
      %p169 = scmp.eq.s32.totalorder %s23, 0
      %p170 = por %p168, %p169
      %p171 = scmp.ne.s32.totalorder %s159, %s160
      %p172 = scmp.eq.s32.totalorder %s24, 1
      %p173 = por %p171, %p172
      %p175 = scmp.ne.s32.totalorder %s160, %s174
      %p176 = scmp.eq.s32.totalorder %s24, 0
      %p177 = por %p175, %p176
      %s178 = ssub.s32 %s18, %s25
      %p179 = scmp.eq.s32.totalorder %s178, 0
      %s181 = sadd.s32 %s180, 1
      %s182 = scalar_select %p179, %s180, %s181
      %p185 = pneg %p179
      %p186 = scmp.eq.s32.totalorder %s18, 1
      %p187 = por %p185, %p186
      %p188 = scmp.ne.s32.totalorder %s180, %s183
      %p189 = scmp.eq.s32.totalorder %s18, 0
      %p190 = por %p188, %p189
      %p191 = scmp.ne.s32.totalorder %s180, %s183
      %p192 = scmp.eq.s32.totalorder %s23, 1
      %p193 = por %p191, %p192
      %p194 = scmp.ne.s32.totalorder %s183, %s184
      %p195 = scmp.eq.s32.totalorder %s23, 0
      %p196 = por %p194, %p195
      %p197 = scmp.ne.s32.totalorder %s183, %s184
      %p198 = scmp.eq.s32.totalorder %s24, 1
      %p199 = por %p197, %p198
      %p201 = scmp.ne.s32.totalorder %s184, %s200
      %p202 = scmp.eq.s32.totalorder %s24, 0
      %p203 = por %p201, %p202
      %p204 = scmp.le.s32.totalorder 1, %s18
      %p205 = scmp.lt.s32.totalorder %s18, 3
      %p206 = pnand %p204, %p205
      %p207 = pneg %p206
      // Predicated region
      $region9: #{encoder_ln_forward.1} parent=5 // pred_check
        _
      $region10: #{encoder_ln_forward.1} parent=5 // pred_check_branch
        %209 = sbr.rel (%p206) target = $region12
      $region11: #{encoder_ln_forward.1} parent=5 // pred_region
        %s210 = ssub.s32 %s18, 1
        // Predicated region
        $region13: #{encoder_ln_forward.1} parent=11 // pred_check
          %p211 = pneg %p65
        $region14: #{encoder_ln_forward.1} parent=11 // pred_check_branch
          %213 = sbr.rel (%p211) target = $region16
        $region15: #{encoder_ln_forward.1} parent=11 // pred_region
          %s215 = ssub.s32 25088, 25088
          %216 = vsyncadd [#allocation5], %s215
          %s217 = sshll.u32 [#allocation4], 4
          %s218 = int_to_ptr.vmem [resolvable:$true] %s217
          %223 = dma.hbm_to_vmem [thread:$0]  %s1, 25088, %s218, [#allocation5], 256, 256, 16
        $region16: #{encoder_ln_forward.1} parent=11 // pred_fallthru
          _
        // Predicated region
        $region17: #{encoder_ln_forward.1} parent=11 // pred_check
          %p224 = pneg %p86
        $region18: #{encoder_ln_forward.1} parent=11 // pred_check_branch
          %226 = sbr.rel (%p224) target = $region20
        $region19: #{encoder_ln_forward.1} parent=11 // pred_region
          %s228 = ssub.s32 64, 64
          %229 = vsyncadd [#allocation5], %s228
          %s231 = sshll.u32 [#allocation6], 4
          %s232 = int_to_ptr.vmem [resolvable:$true] %s231
          %234 = dma.hbm_to_vmem [thread:$0]  %s2, 64, %s232, [#allocation5]
        $region20: #{encoder_ln_forward.1} parent=11 // pred_fallthru
          _
        // Predicated region
        $region21: #{encoder_ln_forward.1} parent=11 // pred_check
          %p235 = pneg %p107
        $region22: #{encoder_ln_forward.1} parent=11 // pred_check_branch
          %237 = sbr.rel (%p235) target = $region24
        $region23: #{encoder_ln_forward.1} parent=11 // pred_region
          %s239 = ssub.s32 4096, 4096
          %240 = vsyncadd [#allocation8], %s239
          %s241 = sshll.u32 [#allocation7], 4
          %s242 = int_to_ptr.vmem [resolvable:$true] %s241
          %247 = dma.hbm_to_vmem [thread:$0]  %s3, 4096, %s242, [#allocation8], 64, 64, 4
        $region24: #{encoder_ln_forward.1} parent=11 // pred_fallthru
          _
        // Predicated region
        $region25: #{encoder_ln_forward.1} parent=11 // pred_check
          %p248 = pneg %p128
        $region26: #{encoder_ln_forward.1} parent=11 // pred_check_branch
          %250 = sbr.rel (%p248) target = $region28
        $region27: #{encoder_ln_forward.1} parent=11 // pred_region
          _
        $region28: #{encoder_ln_forward.1} parent=11 // pred_fallthru
          _
        // Predicated region
        $region29: #{encoder_ln_forward.1} parent=11 // pred_check
          %p251 = pneg %p149
        $region30: #{encoder_ln_forward.1} parent=11 // pred_check_branch
          %253 = sbr.rel (%p251) target = $region32
        $region31: #{encoder_ln_forward.1} parent=11 // pred_region
          %s255 = ssub.s32 1024, 1024
          %256 = vsyncadd [#allocation8], %s255
          %s257 = sshll.u32 [#allocation9], 4
          %s258 = int_to_ptr.vmem [resolvable:$true] %s257
          %263 = dma.hbm_to_vmem [thread:$0]  %s5, 1024, %s258, [#allocation8], 64, 64, 4
        $region32: #{encoder_ln_forward.1} parent=11 // pred_fallthru
          _
        // Predicated region
        $region33: #{encoder_ln_forward.1} parent=11 // pred_check
          %p264 = pneg %p170
        $region34: #{encoder_ln_forward.1} parent=11 // pred_check_branch
          %266 = sbr.rel (%p264) target = $region36
        $region35: #{encoder_ln_forward.1} parent=11 // pred_region
          _
        $region36: #{encoder_ln_forward.1} parent=11 // pred_fallthru
          _
      $region12: #{encoder_ln_forward.1} parent=5 // pred_fallthru
        _
      %p267 = scmp.lt.s32.totalorder %s18, 2
      // Predicated region
      $region37: #{encoder_ln_forward.1} parent=5 // pred_check
        %p268 = pneg %p267
      $region38: #{encoder_ln_forward.1} parent=5 // pred_check_branch
        %270 = sbr.rel (%p268) target = $region40
      $region39: #{encoder_ln_forward.1} parent=5 // pred_region
        // Predicated region
        $region41: #{encoder_ln_forward.1} parent=39 // pred_check
          %p271 = pneg %p38
        $region42: #{encoder_ln_forward.1} parent=39 // pred_check_branch
          %273 = sbr.rel (%p271) target = $region44
        $region43: #{encoder_ln_forward.1} parent=39 // pred_region
          %s274 = sand.u32 %s28, 1
          %s275 = scalar_lea.sflag [#allocation3], %s274
          %s276 = sand.u32 %s28, 1
          %s277 = smul.addr %s276, 112
          %s278 = scalar_lea.vmem [#allocation2], %s277
          %s279 = smul.u32 2, %s18
          %s280 = ssub.s32 3, %s279
          %p281 = scmp.lt.s32.totalorder %s280, 2
          %s282 = scalar_select %p281, %s280, 2
          %s283 = smul.u32 128, %s282
          %s284 = smul.u32 %s283, 7
          %s286 = ssub.s32 1792, %s284
          %287 = vsyncadd %s275, %s286
          %p288 = scmp.ne.s32.totalorder 0, %s284
          %s289 = smul.addr %s279, 7
          %s290 = smul.addr %s289, 128
          %s291 = scalar_lea.hbm %s0, %s290
          %s292 = smul.u32 56, %s282
          %s293 = sshll.u32 %s278, 4
          %s294 = int_to_ptr.vmem [resolvable:$true] %s293
          %s295 = sshll.u32 %s292, 4
          %299 = dma.hbm_to_vmem [thread:$0]  (%p288), %s291, %s295, %s294, %s275, 896, 896, 56
        $region44: #{encoder_ln_forward.1} parent=39 // pred_fallthru
          _
      $region40: #{encoder_ln_forward.1} parent=5 // pred_fallthru
        _
      %p300 = scmp.le.s32.totalorder 1, %s18
      %p301 = scmp.lt.s32.totalorder %s18, 3
      %p302 = pnand %p300, %p301
      %p303 = pneg %p302
      // Predicated region
      $region45: #{encoder_ln_forward.1} parent=5 // pred_check
        _
      $region46: #{encoder_ln_forward.1} parent=5 // pred_check_branch
        %305 = sbr.rel (%p302) target = $region48
      $region47: #{encoder_ln_forward.1} parent=5 // pred_region
        %s306 = ssub.s32 %s18, 1
        %s307 = sand.u32 %s31, 1
        %s308 = scalar_lea.sflag [#allocation3], %s307
        %s309 = sand.u32 %s31, 1
        %s310 = smul.addr %s309, 112
        %s311 = scalar_lea.vmem [#allocation2], %s310
        // Predicated region
        $region49: #{encoder_ln_forward.1} parent=47 // pred_check
          %p312 = pneg %p44
        $region50: #{encoder_ln_forward.1} parent=47 // pred_check_branch
          %314 = sbr.rel (%p312) target = $region52
        $region51: #{encoder_ln_forward.1} parent=47 // pred_region
          %315 = dma.done %s308, 1792
        $region52: #{encoder_ln_forward.1} parent=47 // pred_fallthru
          _
        // Predicated region
        $region53: #{encoder_ln_forward.1} parent=47 // pred_check
          %p316 = pneg %p65
        $region54: #{encoder_ln_forward.1} parent=47 // pred_check_branch
          %318 = sbr.rel (%p316) target = $region56
        $region55: #{encoder_ln_forward.1} parent=47 // pred_region
          %319 = dma.done [#allocation5], 25088
        $region56: #{encoder_ln_forward.1} parent=47 // pred_fallthru
          _
        // Predicated region
        $region57: #{encoder_ln_forward.1} parent=47 // pred_check
          %p320 = pneg %p86
        $region58: #{encoder_ln_forward.1} parent=47 // pred_check_branch
          %322 = sbr.rel (%p320) target = $region60
        $region59: #{encoder_ln_forward.1} parent=47 // pred_region
          %323 = dma.done [#allocation5], 64
        $region60: #{encoder_ln_forward.1} parent=47 // pred_fallthru
          _
        // Predicated region
        $region61: #{encoder_ln_forward.1} parent=47 // pred_check
          %p324 = pneg %p107
        $region62: #{encoder_ln_forward.1} parent=47 // pred_check_branch
          %326 = sbr.rel (%p324) target = $region64
        $region63: #{encoder_ln_forward.1} parent=47 // pred_region
          %327 = dma.done [#allocation8], 4096
        $region64: #{encoder_ln_forward.1} parent=47 // pred_fallthru
          _
        // Predicated region
        $region65: #{encoder_ln_forward.1} parent=47 // pred_check
          %p328 = pneg %p149
        $region66: #{encoder_ln_forward.1} parent=47 // pred_check_branch
          %330 = sbr.rel (%p328) target = $region68
        $region67: #{encoder_ln_forward.1} parent=47 // pred_region
          %331 = dma.done [#allocation8], 1024
        $region68: #{encoder_ln_forward.1} parent=47 // pred_fallthru
          _
        %s332 = sand.u32 %s31, 1
        %s333 = scalar_lea.sflag [#allocation3], %s332
        %s334 = sand.u32 %s31, 1
        %s335 = smul.addr %s334, 112
        %s336 = scalar_lea.vmem [#allocation2], %s335
        %p337 = pneg %p44
        %p338 = pneg %p41
        %p339 = pneg %p65
        %p340 = pneg %p62
        %p341 = pneg %p86
        %p342 = pneg %p83
        %p343 = pneg %p107
        %p344 = pneg %p104
        %p345 = pneg %p128
        %p346 = pneg %p125
        %p347 = pneg %p149
        %p348 = pneg %p146
        %p349 = pneg %p170
        %p350 = pneg %p167
        %p351 = pneg %p196
        %p352 = pneg %p193
        %s353 = sand.u32 %s183, 1
        %s354 = sand.u32 %s183, 1
        %s355 = smul.addr %s354, 16
        %s356 = scalar_lea.vmem [#allocation10], %s355
        %s357 = smul.u32 2, %s23
        %s358 = ssub.s32 3, %s357
        %p359 = scmp.lt.s32.totalorder %s358, 2
        %s360 = scalar_select %p359, %s358, 2
        %s361 = smul.u32 128, %s360
        %s362 = smul.u32 %s361, 7
        %s363 = smul.u32 2, %s23
        %s364 = ssub.s32 3, %s363
        %p365 = scmp.lt.s32.totalorder %s364, 2
        %s366 = scalar_select %p365, %s364, 2
        %s367 = smul.u32 128, %s366
        %v369 = vld [vmem:[%s311] sm:$0xff]
        %v370 = vld [vmem:[%s311 + $0x8] sm:$0xff]
        %v371 = vld [vmem:[%s311 + $0x10] sm:$0xff]
        %v372 = vld [vmem:[%s311 + $0x18] sm:$0xff]
        %v373 = vld [vmem:[%s311 + $0x20] sm:$0xff]
        %v374 = vld [vmem:[%s311 + $0x28] sm:$0xff]
        %v375 = vld [vmem:[%s311 + $0x30] sm:$0xff]
        %v376 = vld [vmem:[%s311 + $0x38] sm:$0xff]
        %v377 = vld [vmem:[%s311 + $0x40] sm:$0xff]
        %v378 = vld [vmem:[%s311 + $0x48] sm:$0xff]
        %v379 = vld [vmem:[%s311 + $0x50] sm:$0xff]
        %v380 = vld [vmem:[%s311 + $0x58] sm:$0xff]
        %v381 = vld [vmem:[%s311 + $0x60] sm:$0xff]
        %v382 = vld [vmem:[%s311 + $0x68] sm:$0xff]
        %v383 = vpack.c.bf16 %v376, %v369
        %v384 = vpack.c.bf16 %v377, %v370
        %v385 = vpack.c.bf16 %v378, %v371
        %v386 = vpack.c.bf16 %v379, %v372
        %v387 = vpack.c.bf16 %v380, %v373
        %v388 = vpack.c.bf16 %v381, %v374
        %v389 = vpack.c.bf16 %v382, %v375
        %v390 = vld [vmem:[#allocation4] sm:$0xff]
        %v391 = vld [vmem:[#allocation4 + $0x8] sm:$0xff]
        %v392 = vld [vmem:[#allocation4 + $0x10] sm:$0xff]
        %v393 = vld [vmem:[#allocation4 + $0x18] sm:$0xff]
        %v394 = vld [vmem:[#allocation4 + $0x20] sm:$0xff]
        %v395 = vld [vmem:[#allocation4 + $0x28] sm:$0xff]
        %v396 = vld [vmem:[#allocation4 + $0x30] sm:$0xff]
        %v397 = vld [vmem:[#allocation4 + $0x38] sm:$0xff]
        %v398 = vld [vmem:[#allocation4 + $0x40] sm:$0xff]
        %v399 = vld [vmem:[#allocation4 + $0x48] sm:$0xff]
        %v400 = vld [vmem:[#allocation4 + $0x50] sm:$0xff]
        %v401 = vld [vmem:[#allocation4 + $0x58] sm:$0xff]
        %v402 = vld [vmem:[#allocation4 + $0x60] sm:$0xff]
        %v403 = vld [vmem:[#allocation4 + $0x68] sm:$0xff]
        %v404 = vld [vmem:[#allocation4 + $0x70] sm:$0xff]
        %v405 = vld [vmem:[#allocation4 + $0x78] sm:$0xff]
        %v406 = vld [vmem:[#allocation4 + $0x80] sm:$0xff]
        %v407 = vld [vmem:[#allocation4 + $0x88] sm:$0xff]
        %v408 = vld [vmem:[#allocation4 + $0x90] sm:$0xff]
        %v409 = vld [vmem:[#allocation4 + $0x98] sm:$0xff]
        %v410 = vld [vmem:[#allocation4 + $0xa0] sm:$0xff]
        %v411 = vld [vmem:[#allocation4 + $0xa8] sm:$0xff]
        %v412 = vld [vmem:[#allocation4 + $0xb0] sm:$0xff]
        %v413 = vld [vmem:[#allocation4 + $0xb8] sm:$0xff]
        %v414 = vld [vmem:[#allocation4 + $0xc0] sm:$0xff]
        %v415 = vld [vmem:[#allocation4 + $0xc8] sm:$0xff]
        %v416 = vld [vmem:[#allocation4 + $0xd0] sm:$0xff]
        %v417 = vld [vmem:[#allocation4 + $0xd8] sm:$0xff]
        %v418 = vld [vmem:[#allocation4 + $0xe0] sm:$0xff]
        %v419 = vld [vmem:[#allocation4 + $0xe8] sm:$0xff]
        %v420 = vld [vmem:[#allocation4 + $0xf0] sm:$0xff]
        %v421 = vld [vmem:[#allocation4 + $0xf8] sm:$0xff]
        %v422 = vld [vmem:[#allocation4 + $0x100] sm:$0xff]
        %v423 = vld [vmem:[#allocation4 + $0x108] sm:$0xff]
        %v424 = vld [vmem:[#allocation4 + $0x110] sm:$0xff]
        %v425 = vld [vmem:[#allocation4 + $0x118] sm:$0xff]
        %v426 = vld [vmem:[#allocation4 + $0x120] sm:$0xff]
        %v427 = vld [vmem:[#allocation4 + $0x128] sm:$0xff]
        %v428 = vld [vmem:[#allocation4 + $0x130] sm:$0xff]
        %v429 = vld [vmem:[#allocation4 + $0x138] sm:$0xff]
        %v430 = vld [vmem:[#allocation4 + $0x140] sm:$0xff]
        %v431 = vld [vmem:[#allocation4 + $0x148] sm:$0xff]
        %v432 = vld [vmem:[#allocation4 + $0x150] sm:$0xff]
        %v433 = vld [vmem:[#allocation4 + $0x158] sm:$0xff]
        %v434 = vld [vmem:[#allocation4 + $0x160] sm:$0xff]
        %v435 = vld [vmem:[#allocation4 + $0x168] sm:$0xff]
        %v436 = vld [vmem:[#allocation4 + $0x170] sm:$0xff]
        %v437 = vld [vmem:[#allocation4 + $0x178] sm:$0xff]
        %v438 = vld [vmem:[#allocation4 + $0x180] sm:$0xff]
        %v439 = vld [vmem:[#allocation4 + $0x188] sm:$0xff]
        %v440 = vld [vmem:[#allocation4 + $0x190] sm:$0xff]
        %v441 = vld [vmem:[#allocation4 + $0x198] sm:$0xff]
        %v442 = vld [vmem:[#allocation4 + $0x1a0] sm:$0xff]
        %v443 = vld [vmem:[#allocation4 + $0x1a8] sm:$0xff]
        %v444 = vld [vmem:[#allocation4 + $0x1b0] sm:$0xff]
        %v445 = vld [vmem:[#allocation4 + $0x1b8] sm:$0xff]
        %v446 = vld [vmem:[#allocation4 + $0x1c0] sm:$0xff]
        %v447 = vld [vmem:[#allocation4 + $0x1c8] sm:$0xff]
        %v448 = vld [vmem:[#allocation4 + $0x1d0] sm:$0xff]
        %v449 = vld [vmem:[#allocation4 + $0x1d8] sm:$0xff]
        %v450 = vld [vmem:[#allocation4 + $0x1e0] sm:$0xff]
        %v451 = vld [vmem:[#allocation4 + $0x1e8] sm:$0xff]
        %v452 = vld [vmem:[#allocation4 + $0x1f0] sm:$0xff]
        %v453 = vld [vmem:[#allocation4 + $0x1f8] sm:$0xff]
        %v454 = vld [vmem:[#allocation4 + $0x200] sm:$0xff]
        %v455 = vld [vmem:[#allocation4 + $0x208] sm:$0xff]
        %v456 = vld [vmem:[#allocation4 + $0x210] sm:$0xff]
        %v457 = vld [vmem:[#allocation4 + $0x218] sm:$0xff]
        %v458 = vld [vmem:[#allocation4 + $0x220] sm:$0xff]
        %v459 = vld [vmem:[#allocation4 + $0x228] sm:$0xff]
        %v460 = vld [vmem:[#allocation4 + $0x230] sm:$0xff]
        %v461 = vld [vmem:[#allocation4 + $0x238] sm:$0xff]
        %v462 = vld [vmem:[#allocation4 + $0x240] sm:$0xff]
        %v463 = vld [vmem:[#allocation4 + $0x248] sm:$0xff]
        %v464 = vld [vmem:[#allocation4 + $0x250] sm:$0xff]
        %v465 = vld [vmem:[#allocation4 + $0x258] sm:$0xff]
        %v466 = vld [vmem:[#allocation4 + $0x260] sm:$0xff]
        %v467 = vld [vmem:[#allocation4 + $0x268] sm:$0xff]
        %v468 = vld [vmem:[#allocation4 + $0x270] sm:$0xff]
        %v469 = vld [vmem:[#allocation4 + $0x278] sm:$0xff]
        %v470 = vld [vmem:[#allocation4 + $0x280] sm:$0xff]
        %v471 = vld [vmem:[#allocation4 + $0x288] sm:$0xff]
        %v472 = vld [vmem:[#allocation4 + $0x290] sm:$0xff]
        %v473 = vld [vmem:[#allocation4 + $0x298] sm:$0xff]
        %v474 = vld [vmem:[#allocation4 + $0x2a0] sm:$0xff]
        %v475 = vld [vmem:[#allocation4 + $0x2a8] sm:$0xff]
        %v476 = vld [vmem:[#allocation4 + $0x2b0] sm:$0xff]
        %v477 = vld [vmem:[#allocation4 + $0x2b8] sm:$0xff]
        %v478 = vld [vmem:[#allocation4 + $0x2c0] sm:$0xff]
        %v479 = vld [vmem:[#allocation4 + $0x2c8] sm:$0xff]
        %v480 = vld [vmem:[#allocation4 + $0x2d0] sm:$0xff]
        %v481 = vld [vmem:[#allocation4 + $0x2d8] sm:$0xff]
        %v482 = vld [vmem:[#allocation4 + $0x2e0] sm:$0xff]
        %v483 = vld [vmem:[#allocation4 + $0x2e8] sm:$0xff]
        %v484 = vld [vmem:[#allocation4 + $0x2f0] sm:$0xff]
        %v485 = vld [vmem:[#allocation4 + $0x2f8] sm:$0xff]
        %v486 = vld [vmem:[#allocation4 + $0x300] sm:$0xff]
        %v487 = vld [vmem:[#allocation4 + $0x308] sm:$0xff]
        %v488 = vld [vmem:[#allocation4 + $0x310] sm:$0xff]
        %v489 = vld [vmem:[#allocation4 + $0x318] sm:$0xff]
        %v490 = vld [vmem:[#allocation4 + $0x320] sm:$0xff]
        %v491 = vld [vmem:[#allocation4 + $0x328] sm:$0xff]
        %v492 = vld [vmem:[#allocation4 + $0x330] sm:$0xff]
        %v493 = vld [vmem:[#allocation4 + $0x338] sm:$0xff]
        %v494 = vld [vmem:[#allocation4 + $0x340] sm:$0xff]
        %v495 = vld [vmem:[#allocation4 + $0x348] sm:$0xff]
        %v496 = vld [vmem:[#allocation4 + $0x350] sm:$0xff]
        %v497 = vld [vmem:[#allocation4 + $0x358] sm:$0xff]
        %v498 = vld [vmem:[#allocation4 + $0x360] sm:$0xff]
        %v499 = vld [vmem:[#allocation4 + $0x368] sm:$0xff]
        %v500 = vld [vmem:[#allocation4 + $0x370] sm:$0xff]
        %v501 = vld [vmem:[#allocation4 + $0x378] sm:$0xff]
        %v502 = vld [vmem:[#allocation4 + $0x380] sm:$0xff]
        %v503 = vld [vmem:[#allocation4 + $0x388] sm:$0xff]
        %v504 = vld [vmem:[#allocation4 + $0x390] sm:$0xff]
        %v505 = vld [vmem:[#allocation4 + $0x398] sm:$0xff]
        %v506 = vld [vmem:[#allocation4 + $0x3a0] sm:$0xff]
        %v507 = vld [vmem:[#allocation4 + $0x3a8] sm:$0xff]
        %v508 = vld [vmem:[#allocation4 + $0x3b0] sm:$0xff]
        %v509 = vld [vmem:[#allocation4 + $0x3b8] sm:$0xff]
        %v510 = vld [vmem:[#allocation4 + $0x3c0] sm:$0xff]
        %v511 = vld [vmem:[#allocation4 + $0x3c8] sm:$0xff]
        %v512 = vld [vmem:[#allocation4 + $0x3d0] sm:$0xff]
        %v513 = vld [vmem:[#allocation4 + $0x3d8] sm:$0xff]
        %v514 = vld [vmem:[#allocation4 + $0x3e0] sm:$0xff]
        %v515 = vld [vmem:[#allocation4 + $0x3e8] sm:$0xff]
        %v516 = vld [vmem:[#allocation4 + $0x3f0] sm:$0xff]
        %v517 = vld [vmem:[#allocation4 + $0x3f8] sm:$0xff]
        %v518 = vld [vmem:[#allocation4 + $0x400] sm:$0xff]
        %v519 = vld [vmem:[#allocation4 + $0x408] sm:$0xff]
        %v520 = vld [vmem:[#allocation4 + $0x410] sm:$0xff]
        %v521 = vld [vmem:[#allocation4 + $0x418] sm:$0xff]
        %v522 = vld [vmem:[#allocation4 + $0x420] sm:$0xff]
        %v523 = vld [vmem:[#allocation4 + $0x428] sm:$0xff]
        %v524 = vld [vmem:[#allocation4 + $0x430] sm:$0xff]
        %v525 = vld [vmem:[#allocation4 + $0x438] sm:$0xff]
        %v526 = vld [vmem:[#allocation4 + $0x440] sm:$0xff]
        %v527 = vld [vmem:[#allocation4 + $0x448] sm:$0xff]
        %v528 = vld [vmem:[#allocation4 + $0x450] sm:$0xff]
        %v529 = vld [vmem:[#allocation4 + $0x458] sm:$0xff]
        %v530 = vld [vmem:[#allocation4 + $0x460] sm:$0xff]
        %v531 = vld [vmem:[#allocation4 + $0x468] sm:$0xff]
        %v532 = vld [vmem:[#allocation4 + $0x470] sm:$0xff]
        %v533 = vld [vmem:[#allocation4 + $0x478] sm:$0xff]
        %v534 = vld [vmem:[#allocation4 + $0x480] sm:$0xff]
        %v535 = vld [vmem:[#allocation4 + $0x488] sm:$0xff]
        %v536 = vld [vmem:[#allocation4 + $0x490] sm:$0xff]
        %v537 = vld [vmem:[#allocation4 + $0x498] sm:$0xff]
        %v538 = vld [vmem:[#allocation4 + $0x4a0] sm:$0xff]
        %v539 = vld [vmem:[#allocation4 + $0x4a8] sm:$0xff]
        %v540 = vld [vmem:[#allocation4 + $0x4b0] sm:$0xff]
        %v541 = vld [vmem:[#allocation4 + $0x4b8] sm:$0xff]
        %v542 = vld [vmem:[#allocation4 + $0x4c0] sm:$0xff]
        %v543 = vld [vmem:[#allocation4 + $0x4c8] sm:$0xff]
        %v544 = vld [vmem:[#allocation4 + $0x4d0] sm:$0xff]
        %v545 = vld [vmem:[#allocation4 + $0x4d8] sm:$0xff]
        %v546 = vld [vmem:[#allocation4 + $0x4e0] sm:$0xff]
        %v547 = vld [vmem:[#allocation4 + $0x4e8] sm:$0xff]
        %v548 = vld [vmem:[#allocation4 + $0x4f0] sm:$0xff]
        %v549 = vld [vmem:[#allocation4 + $0x4f8] sm:$0xff]
        %v550 = vld [vmem:[#allocation4 + $0x500] sm:$0xff]
        %v551 = vld [vmem:[#allocation4 + $0x508] sm:$0xff]
        %v552 = vld [vmem:[#allocation4 + $0x510] sm:$0xff]
        %v553 = vld [vmem:[#allocation4 + $0x518] sm:$0xff]
        %v554 = vld [vmem:[#allocation4 + $0x520] sm:$0xff]
        %v555 = vld [vmem:[#allocation4 + $0x528] sm:$0xff]
        %v556 = vld [vmem:[#allocation4 + $0x530] sm:$0xff]
        %v557 = vld [vmem:[#allocation4 + $0x538] sm:$0xff]
        %v558 = vld [vmem:[#allocation4 + $0x540] sm:$0xff]
        %v559 = vld [vmem:[#allocation4 + $0x548] sm:$0xff]
        %v560 = vld [vmem:[#allocation4 + $0x550] sm:$0xff]
        %v561 = vld [vmem:[#allocation4 + $0x558] sm:$0xff]
        %v562 = vld [vmem:[#allocation4 + $0x560] sm:$0xff]
        %v563 = vld [vmem:[#allocation4 + $0x568] sm:$0xff]
        %v564 = vld [vmem:[#allocation4 + $0x570] sm:$0xff]
        %v565 = vld [vmem:[#allocation4 + $0x578] sm:$0xff]
        %v566 = vld [vmem:[#allocation4 + $0x580] sm:$0xff]
        %v567 = vld [vmem:[#allocation4 + $0x588] sm:$0xff]
        %v568 = vld [vmem:[#allocation4 + $0x590] sm:$0xff]
        %v569 = vld [vmem:[#allocation4 + $0x598] sm:$0xff]
        %v570 = vld [vmem:[#allocation4 + $0x5a0] sm:$0xff]
        %v571 = vld [vmem:[#allocation4 + $0x5a8] sm:$0xff]
        %v572 = vld [vmem:[#allocation4 + $0x5b0] sm:$0xff]
        %v573 = vld [vmem:[#allocation4 + $0x5b8] sm:$0xff]
        %v574 = vld [vmem:[#allocation4 + $0x5c0] sm:$0xff]
        %v575 = vld [vmem:[#allocation4 + $0x5c8] sm:$0xff]
        %v576 = vld [vmem:[#allocation4 + $0x5d0] sm:$0xff]
        %v577 = vld [vmem:[#allocation4 + $0x5d8] sm:$0xff]
        %v578 = vld [vmem:[#allocation4 + $0x5e0] sm:$0xff]
        %v579 = vld [vmem:[#allocation4 + $0x5e8] sm:$0xff]
        %v580 = vld [vmem:[#allocation4 + $0x5f0] sm:$0xff]
        %v581 = vld [vmem:[#allocation4 + $0x5f8] sm:$0xff]
        %v582 = vld [vmem:[#allocation4 + $0x600] sm:$0xff]
        %v583 = vld [vmem:[#allocation4 + $0x608] sm:$0xff]
        %v584 = vld [vmem:[#allocation4 + $0x610] sm:$0xff]
        %v585 = vld [vmem:[#allocation4 + $0x618] sm:$0xff]
        %v586 = vld [vmem:[#allocation6] sm:$0xf]
        %v588 = vlaneseq
        %v589 = vshrl.u32 %v588, 7
        %v590 = vsub.s32 0, %v589
        %v591 = vrot.slane %v586, %v590
        %v592 = vlaneseq
        %v593 = vshrl.u32 %v592, 7
        %v594 = vsub.s32 1, %v593
        %v595 = vrot.slane %v586, %v594
        %v596 = vlaneseq
        %v597 = vshrl.u32 %v596, 7
        %v598 = vsub.s32 2, %v597
        %v599 = vrot.slane %v586, %v598
        %v600 = vlaneseq
        %v601 = vshrl.u32 %v600, 7
        %v602 = vsub.s32 3, %v601
        %v603 = vrot.slane %v586, %v602
        %v804 = vunpack.c.l.b16 %v390
        %v805 = vunpack.c.h.b16 %v390
        %v806 = vunpack.c.l.b16 %v391
        %v807 = vunpack.c.h.b16 %v391
        %v808 = vunpack.c.l.b16 %v392
        %v809 = vunpack.c.h.b16 %v392
        %v810 = vunpack.c.l.b16 %v393
        %v811 = vunpack.c.h.b16 %v393
        %v812 = vunpack.c.l.b16 %v394
        %v813 = vunpack.c.h.b16 %v394
        %v814 = vunpack.c.l.b16 %v395
        %v815 = vunpack.c.h.b16 %v395
        %v816 = vunpack.c.l.b16 %v396
        %v817 = vunpack.c.h.b16 %v396
        %v818 = vunpack.c.l.b16 %v397
        %v819 = vunpack.c.h.b16 %v397
        %v820 = vunpack.c.l.b16 %v398
        %v821 = vunpack.c.h.b16 %v398
        %v822 = vunpack.c.l.b16 %v399
        %v823 = vunpack.c.h.b16 %v399
        %v824 = vunpack.c.l.b16 %v400
        %v825 = vunpack.c.h.b16 %v400
        %v826 = vunpack.c.l.b16 %v401
        %v827 = vunpack.c.h.b16 %v401
        %v828 = vunpack.c.l.b16 %v402
        %v829 = vunpack.c.h.b16 %v402
        %v830 = vunpack.c.l.b16 %v403
        %v831 = vunpack.c.h.b16 %v403
        %v832 = vunpack.c.l.b16 %v404
        %v833 = vunpack.c.h.b16 %v404
        %v834 = vunpack.c.l.b16 %v405
        %v835 = vunpack.c.h.b16 %v405
        %v836 = vunpack.c.l.b16 %v406
        %v837 = vunpack.c.h.b16 %v406
        %v838 = vunpack.c.l.b16 %v407
        %v839 = vunpack.c.h.b16 %v407
        %v840 = vunpack.c.l.b16 %v408
        %v841 = vunpack.c.h.b16 %v408
        %v842 = vunpack.c.l.b16 %v409
        %v843 = vunpack.c.h.b16 %v409
        %v844 = vunpack.c.l.b16 %v410
        %v845 = vunpack.c.h.b16 %v410
        %v846 = vunpack.c.l.b16 %v411
        %v847 = vunpack.c.h.b16 %v411
        %v848 = vunpack.c.l.b16 %v412
        %v849 = vunpack.c.h.b16 %v412
        %v850 = vunpack.c.l.b16 %v413
        %v851 = vunpack.c.h.b16 %v413
        %v852 = vunpack.c.l.b16 %v414
        %v853 = vunpack.c.h.b16 %v414
        %v854 = vunpack.c.l.b16 %v415
        %v855 = vunpack.c.h.b16 %v415
        %v856 = vunpack.c.l.b16 %v416
        %v857 = vunpack.c.h.b16 %v416
        %v858 = vunpack.c.l.b16 %v417
        %v859 = vunpack.c.h.b16 %v417
        %v860 = vunpack.c.l.b16 %v418
        %v861 = vunpack.c.h.b16 %v418
        %v862 = vunpack.c.l.b16 %v419
        %v863 = vunpack.c.h.b16 %v419
        %v864 = vunpack.c.l.b16 %v420
        %v865 = vunpack.c.h.b16 %v420
        %v866 = vunpack.c.l.b16 %v421
        %v867 = vunpack.c.h.b16 %v421
        %v868 = vunpack.c.l.b16 %v422
        %v869 = vunpack.c.h.b16 %v422
        %v870 = vunpack.c.l.b16 %v423
        %v871 = vunpack.c.h.b16 %v423
        %v872 = vunpack.c.l.b16 %v424
        %v873 = vunpack.c.h.b16 %v424
        %v874 = vunpack.c.l.b16 %v425
        %v875 = vunpack.c.h.b16 %v425
        %v876 = vunpack.c.l.b16 %v426
        %v877 = vunpack.c.h.b16 %v426
        %v878 = vunpack.c.l.b16 %v427
        %v879 = vunpack.c.h.b16 %v427
        %v880 = vunpack.c.l.b16 %v428
        %v881 = vunpack.c.h.b16 %v428
        %v882 = vunpack.c.l.b16 %v429
        %v883 = vunpack.c.h.b16 %v429
        %v884 = vunpack.c.l.b16 %v430
        %v885 = vunpack.c.h.b16 %v430
        %v886 = vunpack.c.l.b16 %v431
        %v887 = vunpack.c.h.b16 %v431
        %v888 = vunpack.c.l.b16 %v432
        %v889 = vunpack.c.h.b16 %v432
        %v890 = vunpack.c.l.b16 %v433
        %v891 = vunpack.c.h.b16 %v433
        %v892 = vunpack.c.l.b16 %v434
        %v893 = vunpack.c.h.b16 %v434
        %v894 = vunpack.c.l.b16 %v435
        %v895 = vunpack.c.h.b16 %v435
        %v896 = vunpack.c.l.b16 %v436
        %v897 = vunpack.c.h.b16 %v436
        %v898 = vunpack.c.l.b16 %v437
        %v899 = vunpack.c.h.b16 %v437
        %v900 = vunpack.c.l.b16 %v438
        %v901 = vunpack.c.h.b16 %v438
        %v902 = vunpack.c.l.b16 %v439
        %v903 = vunpack.c.h.b16 %v439
        %v904 = vunpack.c.l.b16 %v440
        %v905 = vunpack.c.h.b16 %v440
        %v906 = vunpack.c.l.b16 %v441
        %v907 = vunpack.c.h.b16 %v441
        %v908 = vunpack.c.l.b16 %v442
        %v909 = vunpack.c.h.b16 %v442
        %v910 = vunpack.c.l.b16 %v443
        %v911 = vunpack.c.h.b16 %v443
        %v912 = vunpack.c.l.b16 %v444
        %v913 = vunpack.c.h.b16 %v444
        %v914 = vunpack.c.l.b16 %v445
        %v915 = vunpack.c.h.b16 %v445
        %v916 = vunpack.c.l.b16 %v446
        %v917 = vunpack.c.h.b16 %v446
        %v918 = vunpack.c.l.b16 %v447
        %v919 = vunpack.c.h.b16 %v447
        %v920 = vunpack.c.l.b16 %v448
        %v921 = vunpack.c.h.b16 %v448
        %v922 = vunpack.c.l.b16 %v449
        %v923 = vunpack.c.h.b16 %v449
        %v924 = vunpack.c.l.b16 %v450
        %v925 = vunpack.c.h.b16 %v450
        %v926 = vunpack.c.l.b16 %v451
        %v927 = vunpack.c.h.b16 %v451
        %v928 = vunpack.c.l.b16 %v452
        %v929 = vunpack.c.h.b16 %v452
        %v930 = vunpack.c.l.b16 %v453
        %v931 = vunpack.c.h.b16 %v453
        %v932 = vunpack.c.l.b16 %v454
        %v933 = vunpack.c.h.b16 %v454
        %v934 = vunpack.c.l.b16 %v455
        %v935 = vunpack.c.h.b16 %v455
        %v936 = vunpack.c.l.b16 %v456
        %v937 = vunpack.c.h.b16 %v456
        %v938 = vunpack.c.l.b16 %v457
        %v939 = vunpack.c.h.b16 %v457
        %v940 = vunpack.c.l.b16 %v458
        %v941 = vunpack.c.h.b16 %v458
        %v942 = vunpack.c.l.b16 %v459
        %v943 = vunpack.c.h.b16 %v459
        %v944 = vunpack.c.l.b16 %v460
        %v945 = vunpack.c.h.b16 %v460
        %v946 = vunpack.c.l.b16 %v461
        %v947 = vunpack.c.h.b16 %v461
        %v948 = vunpack.c.l.b16 %v462
        %v949 = vunpack.c.h.b16 %v462
        %v950 = vunpack.c.l.b16 %v463
        %v951 = vunpack.c.h.b16 %v463
        %v952 = vunpack.c.l.b16 %v464
        %v953 = vunpack.c.h.b16 %v464
        %v954 = vunpack.c.l.b16 %v465
        %v955 = vunpack.c.h.b16 %v465
        %v956 = vunpack.c.l.b16 %v466
        %v957 = vunpack.c.h.b16 %v466
        %v958 = vunpack.c.l.b16 %v467
        %v959 = vunpack.c.h.b16 %v467
        %v960 = vunpack.c.l.b16 %v468
        %v961 = vunpack.c.h.b16 %v468
        %v962 = vunpack.c.l.b16 %v469
        %v963 = vunpack.c.h.b16 %v469
        %v964 = vunpack.c.l.b16 %v470
        %v965 = vunpack.c.h.b16 %v470
        %v966 = vunpack.c.l.b16 %v471
        %v967 = vunpack.c.h.b16 %v471
        %v968 = vunpack.c.l.b16 %v472
        %v969 = vunpack.c.h.b16 %v472
        %v970 = vunpack.c.l.b16 %v473
        %v971 = vunpack.c.h.b16 %v473
        %v972 = vunpack.c.l.b16 %v474
        %v973 = vunpack.c.h.b16 %v474
        %v974 = vunpack.c.l.b16 %v475
        %v975 = vunpack.c.h.b16 %v475
        %v976 = vunpack.c.l.b16 %v476
        %v977 = vunpack.c.h.b16 %v476
        %v978 = vunpack.c.l.b16 %v477
        %v979 = vunpack.c.h.b16 %v477
        %v980 = vunpack.c.l.b16 %v478
        %v981 = vunpack.c.h.b16 %v478
        %v982 = vunpack.c.l.b16 %v479
        %v983 = vunpack.c.h.b16 %v479
        %v984 = vunpack.c.l.b16 %v480
        %v985 = vunpack.c.h.b16 %v480
        %v986 = vunpack.c.l.b16 %v481
        %v987 = vunpack.c.h.b16 %v481
        %v988 = vunpack.c.l.b16 %v482
        %v989 = vunpack.c.h.b16 %v482
        %v990 = vunpack.c.l.b16 %v483
        %v991 = vunpack.c.h.b16 %v483
        %v992 = vunpack.c.l.b16 %v484
        %v993 = vunpack.c.h.b16 %v484
        %v994 = vunpack.c.l.b16 %v485
        %v995 = vunpack.c.h.b16 %v485
        %v996 = vunpack.c.l.b16 %v486
        %v997 = vunpack.c.h.b16 %v486
        %v998 = vunpack.c.l.b16 %v487
        %v999 = vunpack.c.h.b16 %v487
        %v1000 = vunpack.c.l.b16 %v488
        %v1001 = vunpack.c.h.b16 %v488
        %v1002 = vunpack.c.l.b16 %v489
        %v1003 = vunpack.c.h.b16 %v489
        %v1004 = vunpack.c.l.b16 %v490
        %v1005 = vunpack.c.h.b16 %v490
        %v1006 = vunpack.c.l.b16 %v491
        %v1007 = vunpack.c.h.b16 %v491
        %v1008 = vunpack.c.l.b16 %v492
        %v1009 = vunpack.c.h.b16 %v492
        %v1010 = vunpack.c.l.b16 %v493
        %v1011 = vunpack.c.h.b16 %v493
        %v1012 = vunpack.c.l.b16 %v494
        %v1013 = vunpack.c.h.b16 %v494
        %v1014 = vunpack.c.l.b16 %v495
        %v1015 = vunpack.c.h.b16 %v495
        %v1016 = vunpack.c.l.b16 %v496
        %v1017 = vunpack.c.h.b16 %v496
        %v1018 = vunpack.c.l.b16 %v497
        %v1019 = vunpack.c.h.b16 %v497
        %v1020 = vunpack.c.l.b16 %v498
        %v1021 = vunpack.c.h.b16 %v498
        %v1022 = vunpack.c.l.b16 %v499
        %v1023 = vunpack.c.h.b16 %v499
        %v1024 = vunpack.c.l.b16 %v500
        %v1025 = vunpack.c.h.b16 %v500
        %v1026 = vunpack.c.l.b16 %v501
        %v1027 = vunpack.c.h.b16 %v501
        %v1028 = vunpack.c.l.b16 %v502
        %v1029 = vunpack.c.h.b16 %v502
        %v1030 = vunpack.c.l.b16 %v503
        %v1031 = vunpack.c.h.b16 %v503
        %v1032 = vunpack.c.l.b16 %v504
        %v1033 = vunpack.c.h.b16 %v504
        %v1034 = vunpack.c.l.b16 %v505
        %v1035 = vunpack.c.h.b16 %v505
        %v1036 = vunpack.c.l.b16 %v506
        %v1037 = vunpack.c.h.b16 %v506
        %v1038 = vunpack.c.l.b16 %v507
        %v1039 = vunpack.c.h.b16 %v507
        %v1040 = vunpack.c.l.b16 %v508
        %v1041 = vunpack.c.h.b16 %v508
        %v1042 = vunpack.c.l.b16 %v509
        %v1043 = vunpack.c.h.b16 %v509
        %v1044 = vunpack.c.l.b16 %v510
        %v1045 = vunpack.c.h.b16 %v510
        %v1046 = vunpack.c.l.b16 %v511
        %v1047 = vunpack.c.h.b16 %v511
        %v1048 = vunpack.c.l.b16 %v512
        %v1049 = vunpack.c.h.b16 %v512
        %v1050 = vunpack.c.l.b16 %v513
        %v1051 = vunpack.c.h.b16 %v513
        %v1052 = vunpack.c.l.b16 %v514
        %v1053 = vunpack.c.h.b16 %v514
        %v1054 = vunpack.c.l.b16 %v515
        %v1055 = vunpack.c.h.b16 %v515
        %v1056 = vunpack.c.l.b16 %v516
        %v1057 = vunpack.c.h.b16 %v516
        %v1058 = vunpack.c.l.b16 %v517
        %v1059 = vunpack.c.h.b16 %v517
        %v1060 = vunpack.c.l.b16 %v518
        %v1061 = vunpack.c.h.b16 %v518
        %v1062 = vunpack.c.l.b16 %v519
        %v1063 = vunpack.c.h.b16 %v519
        %v1064 = vunpack.c.l.b16 %v520
        %v1065 = vunpack.c.h.b16 %v520
        %v1066 = vunpack.c.l.b16 %v521
        %v1067 = vunpack.c.h.b16 %v521
        %v1068 = vunpack.c.l.b16 %v522
        %v1069 = vunpack.c.h.b16 %v522
        %v1070 = vunpack.c.l.b16 %v523
        %v1071 = vunpack.c.h.b16 %v523
        %v1072 = vunpack.c.l.b16 %v524
        %v1073 = vunpack.c.h.b16 %v524
        %v1074 = vunpack.c.l.b16 %v525
        %v1075 = vunpack.c.h.b16 %v525
        %v1076 = vunpack.c.l.b16 %v526
        %v1077 = vunpack.c.h.b16 %v526
        %v1078 = vunpack.c.l.b16 %v527
        %v1079 = vunpack.c.h.b16 %v527
        %v1080 = vunpack.c.l.b16 %v528
        %v1081 = vunpack.c.h.b16 %v528
        %v1082 = vunpack.c.l.b16 %v529
        %v1083 = vunpack.c.h.b16 %v529
        %v1084 = vunpack.c.l.b16 %v530
        %v1085 = vunpack.c.h.b16 %v530
        %v1086 = vunpack.c.l.b16 %v531
        %v1087 = vunpack.c.h.b16 %v531
        %v1088 = vunpack.c.l.b16 %v532
        %v1089 = vunpack.c.h.b16 %v532
        %v1090 = vunpack.c.l.b16 %v533
        %v1091 = vunpack.c.h.b16 %v533
        %v1092 = vunpack.c.l.b16 %v534
        %v1093 = vunpack.c.h.b16 %v534
        %v1094 = vunpack.c.l.b16 %v535
        %v1095 = vunpack.c.h.b16 %v535
        %v1096 = vunpack.c.l.b16 %v536
        %v1097 = vunpack.c.h.b16 %v536
        %v1098 = vunpack.c.l.b16 %v537
        %v1099 = vunpack.c.h.b16 %v537
        %v1100 = vunpack.c.l.b16 %v538
        %v1101 = vunpack.c.h.b16 %v538
        %v1102 = vunpack.c.l.b16 %v539
        %v1103 = vunpack.c.h.b16 %v539
        %v1104 = vunpack.c.l.b16 %v540
        %v1105 = vunpack.c.h.b16 %v540
        %v1106 = vunpack.c.l.b16 %v541
        %v1107 = vunpack.c.h.b16 %v541
        %v1108 = vunpack.c.l.b16 %v542
        %v1109 = vunpack.c.h.b16 %v542
        %v1110 = vunpack.c.l.b16 %v543
        %v1111 = vunpack.c.h.b16 %v543
        %v1112 = vunpack.c.l.b16 %v544
        %v1113 = vunpack.c.h.b16 %v544
        %v1114 = vunpack.c.l.b16 %v545
        %v1115 = vunpack.c.h.b16 %v545
        %v1116 = vunpack.c.l.b16 %v546
        %v1117 = vunpack.c.h.b16 %v546
        %v1118 = vunpack.c.l.b16 %v547
        %v1119 = vunpack.c.h.b16 %v547
        %v1120 = vunpack.c.l.b16 %v548
        %v1121 = vunpack.c.h.b16 %v548
        %v1122 = vunpack.c.l.b16 %v549
        %v1123 = vunpack.c.h.b16 %v549
        %v1124 = vunpack.c.l.b16 %v550
        %v1125 = vunpack.c.h.b16 %v550
        %v1126 = vunpack.c.l.b16 %v551
        %v1127 = vunpack.c.h.b16 %v551
        %v1128 = vunpack.c.l.b16 %v552
        %v1129 = vunpack.c.h.b16 %v552
        %v1130 = vunpack.c.l.b16 %v553
        %v1131 = vunpack.c.h.b16 %v553
        %v1132 = vunpack.c.l.b16 %v554
        %v1133 = vunpack.c.h.b16 %v554
        %v1134 = vunpack.c.l.b16 %v555
        %v1135 = vunpack.c.h.b16 %v555
        %v1136 = vunpack.c.l.b16 %v556
        %v1137 = vunpack.c.h.b16 %v556
        %v1138 = vunpack.c.l.b16 %v557
        %v1139 = vunpack.c.h.b16 %v557
        %v1140 = vunpack.c.l.b16 %v558
        %v1141 = vunpack.c.h.b16 %v558
        %v1142 = vunpack.c.l.b16 %v559
        %v1143 = vunpack.c.h.b16 %v559
        %v1144 = vunpack.c.l.b16 %v560
        %v1145 = vunpack.c.h.b16 %v560
        %v1146 = vunpack.c.l.b16 %v561
        %v1147 = vunpack.c.h.b16 %v561
        %v1148 = vunpack.c.l.b16 %v562
        %v1149 = vunpack.c.h.b16 %v562
        %v1150 = vunpack.c.l.b16 %v563
        %v1151 = vunpack.c.h.b16 %v563
        %v1152 = vunpack.c.l.b16 %v564
        %v1153 = vunpack.c.h.b16 %v564
        %v1154 = vunpack.c.l.b16 %v565
        %v1155 = vunpack.c.h.b16 %v565
        %v1156 = vunpack.c.l.b16 %v566
        %v1157 = vunpack.c.h.b16 %v566
        %v1158 = vunpack.c.l.b16 %v567
        %v1159 = vunpack.c.h.b16 %v567
        %v1160 = vunpack.c.l.b16 %v568
        %v1161 = vunpack.c.h.b16 %v568
        %v1162 = vunpack.c.l.b16 %v569
        %v1163 = vunpack.c.h.b16 %v569
        %v1164 = vunpack.c.l.b16 %v570
        %v1165 = vunpack.c.h.b16 %v570
        %v1166 = vunpack.c.l.b16 %v571
        %v1167 = vunpack.c.h.b16 %v571
        %v1168 = vunpack.c.l.b16 %v572
        %v1169 = vunpack.c.h.b16 %v572
        %v1170 = vunpack.c.l.b16 %v573
        %v1171 = vunpack.c.h.b16 %v573
        %v1172 = vunpack.c.l.b16 %v574
        %v1173 = vunpack.c.h.b16 %v574
        %v1174 = vunpack.c.l.b16 %v575
        %v1175 = vunpack.c.h.b16 %v575
        %v1176 = vunpack.c.l.b16 %v576
        %v1177 = vunpack.c.h.b16 %v576
        %v1178 = vunpack.c.l.b16 %v577
        %v1179 = vunpack.c.h.b16 %v577
        %v1180 = vunpack.c.l.b16 %v578
        %v1181 = vunpack.c.h.b16 %v578
        %v1182 = vunpack.c.l.b16 %v579
        %v1183 = vunpack.c.h.b16 %v579
        %v1184 = vunpack.c.l.b16 %v580
        %v1185 = vunpack.c.h.b16 %v580
        %v1186 = vunpack.c.l.b16 %v581
        %v1187 = vunpack.c.h.b16 %v581
        %v1188 = vunpack.c.l.b16 %v582
        %v1189 = vunpack.c.h.b16 %v582
        %v1190 = vunpack.c.l.b16 %v583
        %v1191 = vunpack.c.h.b16 %v583
        %v1192 = vunpack.c.l.b16 %v584
        %v1193 = vunpack.c.h.b16 %v584
        %v1194 = vunpack.c.l.b16 %v585
        %v1195 = vunpack.c.h.b16 %v585
        %v1196 = vpack.c.b16 %v808, %v804
        %v1197 = vpack.c.b16 %v809, %v805
        %v1198 = vpack.c.b16 %v810, %v806
        %v1199 = vpack.c.b16 %v811, %v807
        %v1200 = vpack.c.b16 %v816, %v812
        %v1201 = vpack.c.b16 %v817, %v813
        %v1202 = vpack.c.b16 %v818, %v814
        %v1203 = vpack.c.b16 %v819, %v815
        %v1204 = vpack.c.b16 %v824, %v820
        %v1205 = vpack.c.b16 %v825, %v821
        %v1206 = vpack.c.b16 %v826, %v822
        %v1207 = vpack.c.b16 %v827, %v823
        %v1208 = vpack.c.b16 %v832, %v828
        %v1209 = vpack.c.b16 %v833, %v829
        %v1210 = vpack.c.b16 %v834, %v830
        %v1211 = vpack.c.b16 %v835, %v831
        %v1212 = vpack.c.b16 %v840, %v836
        %v1213 = vpack.c.b16 %v841, %v837
        %v1214 = vpack.c.b16 %v842, %v838
        %v1215 = vpack.c.b16 %v843, %v839
        %v1216 = vpack.c.b16 %v848, %v844
        %v1217 = vpack.c.b16 %v849, %v845
        %v1218 = vpack.c.b16 %v850, %v846
        %v1219 = vpack.c.b16 %v851, %v847
        %v1220 = vpack.c.b16 %v856, %v852
        %v1221 = vpack.c.b16 %v857, %v853
        %v1222 = vpack.c.b16 %v858, %v854
        %v1223 = vpack.c.b16 %v859, %v855
        %v1224 = vpack.c.b16 %v864, %v860
        %v1225 = vpack.c.b16 %v865, %v861
        %v1226 = vpack.c.b16 %v866, %v862
        %v1227 = vpack.c.b16 %v867, %v863
        %v1228 = vpack.c.b16 %v872, %v868
        %v1229 = vpack.c.b16 %v873, %v869
        %v1230 = vpack.c.b16 %v874, %v870
        %v1231 = vpack.c.b16 %v875, %v871
        %v1232 = vpack.c.b16 %v880, %v876
        %v1233 = vpack.c.b16 %v881, %v877
        %v1234 = vpack.c.b16 %v882, %v878
        %v1235 = vpack.c.b16 %v883, %v879
        %v1236 = vpack.c.b16 %v888, %v884
        %v1237 = vpack.c.b16 %v889, %v885
        %v1238 = vpack.c.b16 %v890, %v886
        %v1239 = vpack.c.b16 %v891, %v887
        %v1240 = vpack.c.b16 %v896, %v892
        %v1241 = vpack.c.b16 %v897, %v893
        %v1242 = vpack.c.b16 %v898, %v894
        %v1243 = vpack.c.b16 %v899, %v895
        %v1244 = vpack.c.b16 %v904, %v900
        %v1245 = vpack.c.b16 %v905, %v901
        %v1246 = vpack.c.b16 %v906, %v902
        %v1247 = vpack.c.b16 %v907, %v903
        %v1248 = vpack.c.b16 %v912, %v908
        %v1249 = vpack.c.b16 %v913, %v909
        %v1250 = vpack.c.b16 %v914, %v910
        %v1251 = vpack.c.b16 %v915, %v911
        %v1252 = vpack.c.b16 %v920, %v916
        %v1253 = vpack.c.b16 %v921, %v917
        %v1254 = vpack.c.b16 %v922, %v918
        %v1255 = vpack.c.b16 %v923, %v919
        %v1256 = vpack.c.b16 %v928, %v924
        %v1257 = vpack.c.b16 %v929, %v925
        %v1258 = vpack.c.b16 %v930, %v926
        %v1259 = vpack.c.b16 %v931, %v927
        %v1260 = vpack.c.b16 %v936, %v932
        %v1261 = vpack.c.b16 %v937, %v933
        %v1262 = vpack.c.b16 %v938, %v934
        %v1263 = vpack.c.b16 %v939, %v935
        %v1264 = vpack.c.b16 %v944, %v940
        %v1265 = vpack.c.b16 %v945, %v941
        %v1266 = vpack.c.b16 %v946, %v942
        %v1267 = vpack.c.b16 %v947, %v943
        %v1268 = vpack.c.b16 %v952, %v948
        %v1269 = vpack.c.b16 %v953, %v949
        %v1270 = vpack.c.b16 %v954, %v950
        %v1271 = vpack.c.b16 %v955, %v951
        %v1272 = vpack.c.b16 %v960, %v956
        %v1273 = vpack.c.b16 %v961, %v957
        %v1274 = vpack.c.b16 %v962, %v958
        %v1275 = vpack.c.b16 %v963, %v959
        %v1276 = vpack.c.b16 %v968, %v964
        %v1277 = vpack.c.b16 %v969, %v965
        %v1278 = vpack.c.b16 %v970, %v966
        %v1279 = vpack.c.b16 %v971, %v967
        %v1280 = vpack.c.b16 %v976, %v972
        %v1281 = vpack.c.b16 %v977, %v973
        %v1282 = vpack.c.b16 %v978, %v974
        %v1283 = vpack.c.b16 %v979, %v975
        %v1284 = vpack.c.b16 %v984, %v980
        %v1285 = vpack.c.b16 %v985, %v981
        %v1286 = vpack.c.b16 %v986, %v982
        %v1287 = vpack.c.b16 %v987, %v983
        %v1288 = vpack.c.b16 %v992, %v988
        %v1289 = vpack.c.b16 %v993, %v989
        %v1290 = vpack.c.b16 %v994, %v990
        %v1291 = vpack.c.b16 %v995, %v991
        %v1292 = vpack.c.b16 %v1000, %v996
        %v1293 = vpack.c.b16 %v1001, %v997
        %v1294 = vpack.c.b16 %v1002, %v998
        %v1295 = vpack.c.b16 %v1003, %v999
        %v1296 = vpack.c.b16 %v1008, %v1004
        %v1297 = vpack.c.b16 %v1009, %v1005
        %v1298 = vpack.c.b16 %v1010, %v1006
        %v1299 = vpack.c.b16 %v1011, %v1007
        %v1300 = vpack.c.b16 %v1016, %v1012
        %v1301 = vpack.c.b16 %v1017, %v1013
        %v1302 = vpack.c.b16 %v1018, %v1014
        %v1303 = vpack.c.b16 %v1019, %v1015
        %v1304 = vpack.c.b16 %v1024, %v1020
        %v1305 = vpack.c.b16 %v1025, %v1021
        %v1306 = vpack.c.b16 %v1026, %v1022
        %v1307 = vpack.c.b16 %v1027, %v1023
        %v1308 = vpack.c.b16 %v1032, %v1028
        %v1309 = vpack.c.b16 %v1033, %v1029
        %v1310 = vpack.c.b16 %v1034, %v1030
        %v1311 = vpack.c.b16 %v1035, %v1031
        %v1312 = vpack.c.b16 %v1040, %v1036
        %v1313 = vpack.c.b16 %v1041, %v1037
        %v1314 = vpack.c.b16 %v1042, %v1038
        %v1315 = vpack.c.b16 %v1043, %v1039
        %v1316 = vpack.c.b16 %v1048, %v1044
        %v1317 = vpack.c.b16 %v1049, %v1045
        %v1318 = vpack.c.b16 %v1050, %v1046
        %v1319 = vpack.c.b16 %v1051, %v1047
        %v1320 = vpack.c.b16 %v1056, %v1052
        %v1321 = vpack.c.b16 %v1057, %v1053
        %v1322 = vpack.c.b16 %v1058, %v1054
        %v1323 = vpack.c.b16 %v1059, %v1055
        %v1324 = vpack.c.b16 %v1064, %v1060
        %v1325 = vpack.c.b16 %v1065, %v1061
        %v1326 = vpack.c.b16 %v1066, %v1062
        %v1327 = vpack.c.b16 %v1067, %v1063
        %v1328 = vpack.c.b16 %v1072, %v1068
        %v1329 = vpack.c.b16 %v1073, %v1069
        %v1330 = vpack.c.b16 %v1074, %v1070
        %v1331 = vpack.c.b16 %v1075, %v1071
        %v1332 = vpack.c.b16 %v1080, %v1076
        %v1333 = vpack.c.b16 %v1081, %v1077
        %v1334 = vpack.c.b16 %v1082, %v1078
        %v1335 = vpack.c.b16 %v1083, %v1079
        %v1336 = vpack.c.b16 %v1088, %v1084
        %v1337 = vpack.c.b16 %v1089, %v1085
        %v1338 = vpack.c.b16 %v1090, %v1086
        %v1339 = vpack.c.b16 %v1091, %v1087
        %v1340 = vpack.c.b16 %v1096, %v1092
        %v1341 = vpack.c.b16 %v1097, %v1093
        %v1342 = vpack.c.b16 %v1098, %v1094
        %v1343 = vpack.c.b16 %v1099, %v1095
        %v1344 = vpack.c.b16 %v1104, %v1100
        %v1345 = vpack.c.b16 %v1105, %v1101
        %v1346 = vpack.c.b16 %v1106, %v1102
        %v1347 = vpack.c.b16 %v1107, %v1103
        %v1348 = vpack.c.b16 %v1112, %v1108
        %v1349 = vpack.c.b16 %v1113, %v1109
        %v1350 = vpack.c.b16 %v1114, %v1110
        %v1351 = vpack.c.b16 %v1115, %v1111
        %v1352 = vpack.c.b16 %v1120, %v1116
        %v1353 = vpack.c.b16 %v1121, %v1117
        %v1354 = vpack.c.b16 %v1122, %v1118
        %v1355 = vpack.c.b16 %v1123, %v1119
        %v1356 = vpack.c.b16 %v1128, %v1124
        %v1357 = vpack.c.b16 %v1129, %v1125
        %v1358 = vpack.c.b16 %v1130, %v1126
        %v1359 = vpack.c.b16 %v1131, %v1127
        %v1360 = vpack.c.b16 %v1136, %v1132
        %v1361 = vpack.c.b16 %v1137, %v1133
        %v1362 = vpack.c.b16 %v1138, %v1134
        %v1363 = vpack.c.b16 %v1139, %v1135
        %v1364 = vpack.c.b16 %v1144, %v1140
        %v1365 = vpack.c.b16 %v1145, %v1141
        %v1366 = vpack.c.b16 %v1146, %v1142
        %v1367 = vpack.c.b16 %v1147, %v1143
        %v1368 = vpack.c.b16 %v1152, %v1148
        %v1369 = vpack.c.b16 %v1153, %v1149
        %v1370 = vpack.c.b16 %v1154, %v1150
        %v1371 = vpack.c.b16 %v1155, %v1151
        %v1372 = vpack.c.b16 %v1160, %v1156
        %v1373 = vpack.c.b16 %v1161, %v1157
        %v1374 = vpack.c.b16 %v1162, %v1158
        %v1375 = vpack.c.b16 %v1163, %v1159
        %v1376 = vpack.c.b16 %v1168, %v1164
        %v1377 = vpack.c.b16 %v1169, %v1165
        %v1378 = vpack.c.b16 %v1170, %v1166
        %v1379 = vpack.c.b16 %v1171, %v1167
        %v1380 = vpack.c.b16 %v1176, %v1172
        %v1381 = vpack.c.b16 %v1177, %v1173
        %v1382 = vpack.c.b16 %v1178, %v1174
        %v1383 = vpack.c.b16 %v1179, %v1175
        %v1384 = vpack.c.b16 %v1184, %v1180
        %v1385 = vpack.c.b16 %v1185, %v1181
        %v1386 = vpack.c.b16 %v1186, %v1182
        %v1387 = vpack.c.b16 %v1187, %v1183
        %v1388 = vpack.c.b16 %v1192, %v1188
        %v1389 = vpack.c.b16 %v1193, %v1189
        %v1390 = vpack.c.b16 %v1194, %v1190
        %v1391 = vpack.c.b16 %v1195, %v1191
        %vm1588 = vcmask 130048
        %v1590 = vsel %vm1588, %v389, 0
        %1592 = vmatprep.subr.bf16.mxu0 %v1197
        %1593 = vmatpush1.bf16.msra.mxu0 %v1196
        %1594 = vmatprep.subr.bf16.mxu0 %v1201
        %1595 = vmatpush1.bf16.msra.mxu0 %v1200
        %1596 = vmatprep.subr.bf16.mxu0 %v1205
        %1597 = vmatpush1.bf16.msra.mxu0 %v1204
        %1598 = vmatprep.subr.bf16.mxu0 %v1209
        %1599 = vmatpush1.bf16.msra.mxu0 %v1208
        %1600 = vmatprep.subr.bf16.mxu0 %v1213
        %1601 = vmatpush1.bf16.msra.mxu0 %v1212
        %1602 = vmatprep.subr.bf16.mxu0 %v1217
        %1603 = vmatpush1.bf16.msra.mxu0 %v1216
        %1604 = vmatprep.subr.bf16.mxu0 %v1221
        %1605 = vmatpush1.bf16.msra.mxu0 %v1220
        %1606 = vmatprep.subr.bf16.mxu0 %v1225
        %1607 = vmatpush1.bf16.msra.mxu0 %v1224
        %1608 = vmatprep.subr.bf16.mxu0 %v1229
        %1609 = vmatpush1.bf16.msra.mxu0 %v1228
        %1610 = vmatprep.subr.bf16.mxu0 %v1233
        %1611 = vmatpush1.bf16.msra.mxu0 %v1232
        %1612 = vmatprep.subr.bf16.mxu0 %v1237
        %1613 = vmatpush1.bf16.msra.mxu0 %v1236
        %1614 = vmatprep.subr.bf16.mxu0 %v1241
        %1615 = vmatpush1.bf16.msra.mxu0 %v1240
        %1616 = vmatprep.subr.bf16.mxu0 %v1245
        %1617 = vmatpush1.bf16.msra.mxu0 %v1244
        %1618 = vmatprep.subr.bf16.mxu0 %v1249
        %1619 = vmatpush1.bf16.msra.mxu0 %v1248
        %1620 = vmatprep.subr.bf16.mxu0 %v1253
        %1621 = vmatpush1.bf16.msra.mxu0 %v1252
        %1622 = vmatprep.subr.bf16.mxu0 %v1257
        %1623 = vmatpush1.bf16.msra.mxu0 %v1256
        %1624 = vmatprep.mubr.bf16.mxu0 %v384
        %1625 = vmatmul.mubr.bf16.gmra.mrb[0].mxu0 %v383
        %v1626 = vpop.f32.mrb[0].mxu0
        %v1627 = vadd.f32 %v591, %v1626
        %v1628 = vpop.f32.mrb[0].mxu0
        %v1629 = vadd.f32 %v595, %v1628
        %v1630 = vpop.f32.mrb[0].mxu0
        %v1631 = vadd.f32 %v591, %v1630
        %v1632 = vpop.f32.mrb[0].mxu0
        %v1633 = vadd.f32 %v595, %v1632
        %1634 = vdwg.mxu0
        %1635 = vmatprep.subr.bf16.mxu0 %v1261
        %1636 = vmatpush1.bf16.msra.mxu0 %v1260
        %1637 = vmatprep.subr.bf16.mxu0 %v1265
        %1638 = vmatpush1.bf16.msra.mxu0 %v1264
        %1639 = vmatprep.subr.bf16.mxu0 %v1269
        %1640 = vmatpush1.bf16.msra.mxu0 %v1268
        %1641 = vmatprep.subr.bf16.mxu0 %v1273
        %1642 = vmatpush1.bf16.msra.mxu0 %v1272
        %1643 = vmatprep.subr.bf16.mxu0 %v1277
        %1644 = vmatpush1.bf16.msra.mxu0 %v1276
        %1645 = vmatprep.subr.bf16.mxu0 %v1281
        %1646 = vmatpush1.bf16.msra.mxu0 %v1280
        %1647 = vmatprep.subr.bf16.mxu0 %v1285
        %1648 = vmatpush1.bf16.msra.mxu0 %v1284
        %1649 = vmatprep.subr.bf16.mxu0 %v1289
        %1650 = vmatpush1.bf16.msra.mxu0 %v1288
        %1651 = vmatprep.subr.bf16.mxu0 %v1293
        %1652 = vmatpush1.bf16.msra.mxu0 %v1292
        %1653 = vmatprep.subr.bf16.mxu0 %v1297
        %1654 = vmatpush1.bf16.msra.mxu0 %v1296
        %1655 = vmatprep.subr.bf16.mxu0 %v1301
        %1656 = vmatpush1.bf16.msra.mxu0 %v1300
        %1657 = vmatprep.subr.bf16.mxu0 %v1305
        %1658 = vmatpush1.bf16.msra.mxu0 %v1304
        %1659 = vmatprep.subr.bf16.mxu0 %v1309
        %1660 = vmatpush1.bf16.msra.mxu0 %v1308
        %1661 = vmatprep.subr.bf16.mxu0 %v1313
        %1662 = vmatpush1.bf16.msra.mxu0 %v1312
        %1663 = vmatprep.subr.bf16.mxu0 %v1317
        %1664 = vmatpush1.bf16.msra.mxu0 %v1316
        %1665 = vmatprep.subr.bf16.mxu0 %v1321
        %1666 = vmatpush1.bf16.msra.mxu0 %v1320
        %1667 = vmatprep.mubr.bf16.mxu0 %v386
        %1668 = vmatmul.mubr.bf16.gmra.mrb[0].mxu0 %v385
        %v1669 = vpop.f32.mrb[0].mxu0
        %v1670 = vadd.f32 %v1627, %v1669
        %v1671 = vpop.f32.mrb[0].mxu0
        %v1672 = vadd.f32 %v1629, %v1671
        %v1673 = vpop.f32.mrb[0].mxu0
        %v1674 = vadd.f32 %v1631, %v1673
        %v1675 = vpop.f32.mrb[0].mxu0
        %v1676 = vadd.f32 %v1633, %v1675
        %1677 = vdwg.mxu0
        %1678 = vmatprep.subr.bf16.mxu0 %v1325
        %1679 = vmatpush1.bf16.msra.mxu0 %v1324
        %1680 = vmatprep.subr.bf16.mxu0 %v1329
        %1681 = vmatpush1.bf16.msra.mxu0 %v1328
        %1682 = vmatprep.subr.bf16.mxu0 %v1333
        %1683 = vmatpush1.bf16.msra.mxu0 %v1332
        %1684 = vmatprep.subr.bf16.mxu0 %v1337
        %1685 = vmatpush1.bf16.msra.mxu0 %v1336
        %1686 = vmatprep.subr.bf16.mxu0 %v1341
        %1687 = vmatpush1.bf16.msra.mxu0 %v1340
        %1688 = vmatprep.subr.bf16.mxu0 %v1345
        %1689 = vmatpush1.bf16.msra.mxu0 %v1344
        %1690 = vmatprep.subr.bf16.mxu0 %v1349
        %1691 = vmatpush1.bf16.msra.mxu0 %v1348
        %1692 = vmatprep.subr.bf16.mxu0 %v1353
        %1693 = vmatpush1.bf16.msra.mxu0 %v1352
        %1694 = vmatprep.subr.bf16.mxu0 %v1357
        %1695 = vmatpush1.bf16.msra.mxu0 %v1356
        %1696 = vmatprep.subr.bf16.mxu0 %v1361
        %1697 = vmatpush1.bf16.msra.mxu0 %v1360
        %1698 = vmatprep.subr.bf16.mxu0 %v1365
        %1699 = vmatpush1.bf16.msra.mxu0 %v1364
        %1700 = vmatprep.subr.bf16.mxu0 %v1369
        %1701 = vmatpush1.bf16.msra.mxu0 %v1368
        %1702 = vmatprep.subr.bf16.mxu0 %v1373
        %1703 = vmatpush1.bf16.msra.mxu0 %v1372
        %1704 = vmatprep.subr.bf16.mxu0 %v1377
        %1705 = vmatpush1.bf16.msra.mxu0 %v1376
        %1706 = vmatprep.subr.bf16.mxu0 %v1381
        %1707 = vmatpush1.bf16.msra.mxu0 %v1380
        %1708 = vmatprep.subr.bf16.mxu0 %v1385
        %1709 = vmatpush1.bf16.msra.mxu0 %v1384
        %1710 = vmatprep.mubr.bf16.mxu0 %v388
        %1711 = vmatmul.mubr.bf16.gmra.mrb[0].mxu0 %v387
        %v1712 = vpop.f32.mrb[0].mxu0
        %v1713 = vadd.f32 %v1670, %v1712
        %v1714 = vpop.f32.mrb[0].mxu0
        %v1715 = vadd.f32 %v1672, %v1714
        %v1716 = vpop.f32.mrb[0].mxu0
        %v1717 = vadd.f32 %v1674, %v1716
        %v1718 = vpop.f32.mrb[0].mxu0
        %v1719 = vadd.f32 %v1676, %v1718
        %1720 = vdwg.mxu0
        %1721 = vmatprep.subr.bf16.mxu0 %v1389
        %1722 = vmatpush1.bf16.msra.mxu0 %v1388
        %1723 = vmatprep.subr.bf16.mxu0 0
        %1724 = vmatpush1.bf16.msra.mxu0 0
        %1725 = vmatprep.subr.bf16.mxu0 0
        %1726 = vmatpush1.bf16.msra.mxu0 0
        %1727 = vmatprep.subr.bf16.mxu0 0
        %1728 = vmatpush1.bf16.msra.mxu0 0
        %1729 = vmatprep.subr.bf16.mxu0 0
        %1730 = vmatpush1.bf16.msra.mxu0 0
        %1731 = vmatprep.subr.bf16.mxu0 0
        %1732 = vmatpush1.bf16.msra.mxu0 0
        %1733 = vmatprep.subr.bf16.mxu0 0
        %1734 = vmatpush1.bf16.msra.mxu0 0
        %1735 = vmatprep.subr.bf16.mxu0 0
        %1736 = vmatpush1.bf16.msra.mxu0 0
        %1737 = vmatprep.subr.bf16.mxu0 0
        %1738 = vmatpush1.bf16.msra.mxu0 0
        %1739 = vmatprep.subr.bf16.mxu0 0
        %1740 = vmatpush1.bf16.msra.mxu0 0
        %1741 = vmatprep.subr.bf16.mxu0 0
        %1742 = vmatpush1.bf16.msra.mxu0 0
        %1743 = vmatprep.subr.bf16.mxu0 0
        %1744 = vmatpush1.bf16.msra.mxu0 0
        %1745 = vmatprep.subr.bf16.mxu0 0
        %1746 = vmatpush1.bf16.msra.mxu0 0
        %1747 = vmatprep.subr.bf16.mxu0 0
        %1748 = vmatpush1.bf16.msra.mxu0 0
        %1749 = vmatprep.subr.bf16.mxu0 0
        %1750 = vmatpush1.bf16.msra.mxu0 0
        %1751 = vmatprep.subr.bf16.mxu0 0
        %1752 = vmatpush1.bf16.msra.mxu0 0
        %1753 = vmatprep.mubr.bf16.mxu0 0
        %1754 = vmatmul.mubr.bf16.gmra.mrb[0].mxu0 %v1590
        %v1755 = vpop.f32.mrb[0].mxu0
        %v1756 = vadd.f32 %v1713, %v1755
        %v1757 = vpop.f32.mrb[0].mxu0
        %v1758 = vadd.f32 %v1715, %v1757
        %v1759 = vpop.f32.mrb[0].mxu0
        %v1760 = vadd.f32 %v1717, %v1759
        %v1761 = vpop.f32.mrb[0].mxu0
        %v1762 = vadd.f32 %v1719, %v1761
        %1763 = vdwg.mxu0
        %1764 = vmatprep.subr.bf16.mxu0 %v1199
        %1765 = vmatpush1.bf16.msra.mxu0 %v1198
        %1766 = vmatprep.subr.bf16.mxu0 %v1203
        %1767 = vmatpush1.bf16.msra.mxu0 %v1202
        %1768 = vmatprep.subr.bf16.mxu0 %v1207
        %1769 = vmatpush1.bf16.msra.mxu0 %v1206
        %1770 = vmatprep.subr.bf16.mxu0 %v1211
        %1771 = vmatpush1.bf16.msra.mxu0 %v1210
        %1772 = vmatprep.subr.bf16.mxu0 %v1215
        %1773 = vmatpush1.bf16.msra.mxu0 %v1214
        %1774 = vmatprep.subr.bf16.mxu0 %v1219
        %1775 = vmatpush1.bf16.msra.mxu0 %v1218
        %1776 = vmatprep.subr.bf16.mxu0 %v1223
        %1777 = vmatpush1.bf16.msra.mxu0 %v1222
        %1778 = vmatprep.subr.bf16.mxu0 %v1227
        %1779 = vmatpush1.bf16.msra.mxu0 %v1226
        %1780 = vmatprep.subr.bf16.mxu0 %v1231
        %1781 = vmatpush1.bf16.msra.mxu0 %v1230
        %1782 = vmatprep.subr.bf16.mxu0 %v1235
        %1783 = vmatpush1.bf16.msra.mxu0 %v1234
        %1784 = vmatprep.subr.bf16.mxu0 %v1239
        %1785 = vmatpush1.bf16.msra.mxu0 %v1238
        %1786 = vmatprep.subr.bf16.mxu0 %v1243
        %1787 = vmatpush1.bf16.msra.mxu0 %v1242
        %1788 = vmatprep.subr.bf16.mxu0 %v1247
        %1789 = vmatpush1.bf16.msra.mxu0 %v1246
        %1790 = vmatprep.subr.bf16.mxu0 %v1251
        %1791 = vmatpush1.bf16.msra.mxu0 %v1250
        %1792 = vmatprep.subr.bf16.mxu0 %v1255
        %1793 = vmatpush1.bf16.msra.mxu0 %v1254
        %1794 = vmatprep.subr.bf16.mxu0 %v1259
        %1795 = vmatpush1.bf16.msra.mxu0 %v1258
        %1796 = vmatprep.mubr.bf16.mxu0 %v384
        %1797 = vmatmul.mubr.bf16.gmra.mrb[0].mxu0 %v383
        %v1798 = vpop.f32.mrb[0].mxu0
        %v1799 = vadd.f32 %v599, %v1798
        %v1800 = vpop.f32.mrb[0].mxu0
        %v1801 = vadd.f32 %v603, %v1800
        %v1802 = vpop.f32.mrb[0].mxu0
        %v1803 = vadd.f32 %v599, %v1802
        %v1804 = vpop.f32.mrb[0].mxu0
        %v1805 = vadd.f32 %v603, %v1804
        %1806 = vdwg.mxu0
        %1807 = vmatprep.subr.bf16.mxu0 %v1263
        %1808 = vmatpush1.bf16.msra.mxu0 %v1262
        %1809 = vmatprep.subr.bf16.mxu0 %v1267
        %1810 = vmatpush1.bf16.msra.mxu0 %v1266
        %1811 = vmatprep.subr.bf16.mxu0 %v1271
        %1812 = vmatpush1.bf16.msra.mxu0 %v1270
        %1813 = vmatprep.subr.bf16.mxu0 %v1275
        %1814 = vmatpush1.bf16.msra.mxu0 %v1274
        %1815 = vmatprep.subr.bf16.mxu0 %v1279
        %1816 = vmatpush1.bf16.msra.mxu0 %v1278
        %1817 = vmatprep.subr.bf16.mxu0 %v1283
        %1818 = vmatpush1.bf16.msra.mxu0 %v1282
        %1819 = vmatprep.subr.bf16.mxu0 %v1287
        %1820 = vmatpush1.bf16.msra.mxu0 %v1286
        %1821 = vmatprep.subr.bf16.mxu0 %v1291
        %1822 = vmatpush1.bf16.msra.mxu0 %v1290
        %1823 = vmatprep.subr.bf16.mxu0 %v1295
        %1824 = vmatpush1.bf16.msra.mxu0 %v1294
        %1825 = vmatprep.subr.bf16.mxu0 %v1299
        %1826 = vmatpush1.bf16.msra.mxu0 %v1298
        %1827 = vmatprep.subr.bf16.mxu0 %v1303
        %1828 = vmatpush1.bf16.msra.mxu0 %v1302
        %1829 = vmatprep.subr.bf16.mxu0 %v1307
        %1830 = vmatpush1.bf16.msra.mxu0 %v1306
        %1831 = vmatprep.subr.bf16.mxu0 %v1311
        %1832 = vmatpush1.bf16.msra.mxu0 %v1310
        %1833 = vmatprep.subr.bf16.mxu0 %v1315
        %1834 = vmatpush1.bf16.msra.mxu0 %v1314
        %1835 = vmatprep.subr.bf16.mxu0 %v1319
        %1836 = vmatpush1.bf16.msra.mxu0 %v1318
        %1837 = vmatprep.subr.bf16.mxu0 %v1323
        %1838 = vmatpush1.bf16.msra.mxu0 %v1322
        %1839 = vmatprep.mubr.bf16.mxu0 %v386
        %1840 = vmatmul.mubr.bf16.gmra.mrb[0].mxu0 %v385
        %v1841 = vpop.f32.mrb[0].mxu0
        %v1842 = vadd.f32 %v1799, %v1841
        %v1843 = vpop.f32.mrb[0].mxu0
        %v1844 = vadd.f32 %v1801, %v1843
        %v1845 = vpop.f32.mrb[0].mxu0
        %v1846 = vadd.f32 %v1803, %v1845
        %v1847 = vpop.f32.mrb[0].mxu0
        %v1848 = vadd.f32 %v1805, %v1847
        %1849 = vdwg.mxu0
        %1850 = vmatprep.subr.bf16.mxu0 %v1327
        %1851 = vmatpush1.bf16.msra.mxu0 %v1326
        %1852 = vmatprep.subr.bf16.mxu0 %v1331
        %1853 = vmatpush1.bf16.msra.mxu0 %v1330
        %1854 = vmatprep.subr.bf16.mxu0 %v1335
        %1855 = vmatpush1.bf16.msra.mxu0 %v1334
        %1856 = vmatprep.subr.bf16.mxu0 %v1339
        %1857 = vmatpush1.bf16.msra.mxu0 %v1338
        %1858 = vmatprep.subr.bf16.mxu0 %v1343
        %1859 = vmatpush1.bf16.msra.mxu0 %v1342
        %1860 = vmatprep.subr.bf16.mxu0 %v1347
        %1861 = vmatpush1.bf16.msra.mxu0 %v1346
        %1862 = vmatprep.subr.bf16.mxu0 %v1351
        %1863 = vmatpush1.bf16.msra.mxu0 %v1350
        %1864 = vmatprep.subr.bf16.mxu0 %v1355
        %1865 = vmatpush1.bf16.msra.mxu0 %v1354
        %1866 = vmatprep.subr.bf16.mxu0 %v1359
        %1867 = vmatpush1.bf16.msra.mxu0 %v1358
        %1868 = vmatprep.subr.bf16.mxu0 %v1363
        %1869 = vmatpush1.bf16.msra.mxu0 %v1362
        %1870 = vmatprep.subr.bf16.mxu0 %v1367
        %1871 = vmatpush1.bf16.msra.mxu0 %v1366
        %1872 = vmatprep.subr.bf16.mxu0 %v1371
        %1873 = vmatpush1.bf16.msra.mxu0 %v1370
        %1874 = vmatprep.subr.bf16.mxu0 %v1375
        %1875 = vmatpush1.bf16.msra.mxu0 %v1374
        %1876 = vmatprep.subr.bf16.mxu0 %v1379
        %1877 = vmatpush1.bf16.msra.mxu0 %v1378
        %1878 = vmatprep.subr.bf16.mxu0 %v1383
        %1879 = vmatpush1.bf16.msra.mxu0 %v1382
        %1880 = vmatprep.subr.bf16.mxu0 %v1387
        %1881 = vmatpush1.bf16.msra.mxu0 %v1386
        %1882 = vmatprep.mubr.bf16.mxu0 %v388
        %1883 = vmatmul.mubr.bf16.gmra.mrb[0].mxu0 %v387
        %v1884 = vpop.f32.mrb[0].mxu0
        %v1885 = vadd.f32 %v1842, %v1884
        %v1886 = vpop.f32.mrb[0].mxu0
        %v1887 = vadd.f32 %v1844, %v1886
        %v1888 = vpop.f32.mrb[0].mxu0
        %v1889 = vadd.f32 %v1846, %v1888
        %v1890 = vpop.f32.mrb[0].mxu0
        %v1891 = vadd.f32 %v1848, %v1890
        %1892 = vdwg.mxu0
        %1893 = vmatprep.subr.bf16.mxu0 %v1391
        %1894 = vmatpush1.bf16.msra.mxu0 %v1390
        %1895 = vmatprep.subr.bf16.mxu0 0
        %1896 = vmatpush1.bf16.msra.mxu0 0
        %1897 = vmatprep.subr.bf16.mxu0 0
        %1898 = vmatpush1.bf16.msra.mxu0 0
        %1899 = vmatprep.subr.bf16.mxu0 0
        %1900 = vmatpush1.bf16.msra.mxu0 0
        %1901 = vmatprep.subr.bf16.mxu0 0
        %1902 = vmatpush1.bf16.msra.mxu0 0
        %1903 = vmatprep.subr.bf16.mxu0 0
        %1904 = vmatpush1.bf16.msra.mxu0 0
        %1905 = vmatprep.subr.bf16.mxu0 0
        %1906 = vmatpush1.bf16.msra.mxu0 0
        %1907 = vmatprep.subr.bf16.mxu0 0
        %1908 = vmatpush1.bf16.msra.mxu0 0
        %1909 = vmatprep.subr.bf16.mxu0 0
        %1910 = vmatpush1.bf16.msra.mxu0 0
        %1911 = vmatprep.subr.bf16.mxu0 0
        %1912 = vmatpush1.bf16.msra.mxu0 0
        %1913 = vmatprep.subr.bf16.mxu0 0
        %1914 = vmatpush1.bf16.msra.mxu0 0
        %1915 = vmatprep.subr.bf16.mxu0 0
        %1916 = vmatpush1.bf16.msra.mxu0 0
        %1917 = vmatprep.subr.bf16.mxu0 0
        %1918 = vmatpush1.bf16.msra.mxu0 0
        %1919 = vmatprep.subr.bf16.mxu0 0
        %1920 = vmatpush1.bf16.msra.mxu0 0
        %1921 = vmatprep.subr.bf16.mxu0 0
        %1922 = vmatpush1.bf16.msra.mxu0 0
        %1923 = vmatprep.subr.bf16.mxu0 0
        %1924 = vmatpush1.bf16.msra.mxu0 0
        %1925 = vmatprep.mubr.bf16.mxu0 0
        %1926 = vmatmul.mubr.bf16.gmra.mrb[0].mxu0 %v1590
        %v1927 = vpop.f32.mrb[0].mxu0
        %v1928 = vadd.f32 %v1885, %v1927
        %v1929 = vpop.f32.mrb[0].mxu0
        %v1930 = vadd.f32 %v1887, %v1929
        %v1931 = vpop.f32.mrb[0].mxu0
        %v1932 = vadd.f32 %v1889, %v1931
        %v1933 = vpop.f32.mrb[0].mxu0
        %v1934 = vadd.f32 %v1891, %v1933
        %1935 = vdwg.mxu0
        %v1936 = vmax.f32 %v1756, 0.0
        %v1937 = vmax.f32 %v1758, 0.0
        %v1938 = vmax.f32 %v1928, 0.0
        %v1939 = vmax.f32 %v1930, 0.0
        %v1940 = vmax.f32 %v1760, 0.0
        %v1941 = vmax.f32 %v1762, 0.0
        %v1942 = vmax.f32 %v1932, 0.0
        %v1943 = vmax.f32 %v1934, 0.0
        %v1944 = vpack.c.bf16 %v1940, %v1936
        %v1945 = vpack.c.bf16 %v1941, %v1937
        %v1946 = vpack.c.bf16 %v1942, %v1938
        %v1947 = vpack.c.bf16 %v1943, %v1939
        %v1948 = vld [vmem:[#allocation7] sm:$0xf]
        %v1949 = vld [vmem:[#allocation7 + $0x4] sm:$0xf]
        %v1950 = vld [vmem:[#allocation7 + $0x8] sm:$0xf]
        %v1951 = vld [vmem:[#allocation7 + $0xc] sm:$0xf]
        %v1952 = vld [vmem:[#allocation7 + $0x10] sm:$0xf]
        %v1953 = vld [vmem:[#allocation7 + $0x14] sm:$0xf]
        %v1954 = vld [vmem:[#allocation7 + $0x18] sm:$0xf]
        %v1955 = vld [vmem:[#allocation7 + $0x1c] sm:$0xf]
        %v1956 = vld [vmem:[#allocation7 + $0x20] sm:$0xf]
        %v1957 = vld [vmem:[#allocation7 + $0x24] sm:$0xf]
        %v1958 = vld [vmem:[#allocation7 + $0x28] sm:$0xf]
        %v1959 = vld [vmem:[#allocation7 + $0x2c] sm:$0xf]
        %v1960 = vld [vmem:[#allocation7 + $0x30] sm:$0xf]
        %v1961 = vld [vmem:[#allocation7 + $0x34] sm:$0xf]
        %v1962 = vld [vmem:[#allocation7 + $0x38] sm:$0xf]
        %v1963 = vld [vmem:[#allocation7 + $0x3c] sm:$0xf]
        %v1964 = vld [vmem:[#allocation7 + $0x40] sm:$0xf]
        %v1965 = vld [vmem:[#allocation7 + $0x44] sm:$0xf]
        %v1966 = vld [vmem:[#allocation7 + $0x48] sm:$0xf]
        %v1967 = vld [vmem:[#allocation7 + $0x4c] sm:$0xf]
        %v1968 = vld [vmem:[#allocation7 + $0x50] sm:$0xf]
        %v1969 = vld [vmem:[#allocation7 + $0x54] sm:$0xf]
        %v1970 = vld [vmem:[#allocation7 + $0x58] sm:$0xf]
        %v1971 = vld [vmem:[#allocation7 + $0x5c] sm:$0xf]
        %v1972 = vld [vmem:[#allocation7 + $0x60] sm:$0xf]
        %v1973 = vld [vmem:[#allocation7 + $0x64] sm:$0xf]
        %v1974 = vld [vmem:[#allocation7 + $0x68] sm:$0xf]
        %v1975 = vld [vmem:[#allocation7 + $0x6c] sm:$0xf]
        %v1976 = vld [vmem:[#allocation7 + $0x70] sm:$0xf]
        %v1977 = vld [vmem:[#allocation7 + $0x74] sm:$0xf]
        %v1978 = vld [vmem:[#allocation7 + $0x78] sm:$0xf]
        %v1979 = vld [vmem:[#allocation7 + $0x7c] sm:$0xf]
        %v1980 = vld [vmem:[#allocation7 + $0x80] sm:$0xf]
        %v1981 = vld [vmem:[#allocation7 + $0x84] sm:$0xf]
        %v1982 = vld [vmem:[#allocation7 + $0x88] sm:$0xf]
        %v1983 = vld [vmem:[#allocation7 + $0x8c] sm:$0xf]
        %v1984 = vld [vmem:[#allocation7 + $0x90] sm:$0xf]
        %v1985 = vld [vmem:[#allocation7 + $0x94] sm:$0xf]
        %v1986 = vld [vmem:[#allocation7 + $0x98] sm:$0xf]
        %v1987 = vld [vmem:[#allocation7 + $0x9c] sm:$0xf]
        %v1988 = vld [vmem:[#allocation7 + $0xa0] sm:$0xf]
        %v1989 = vld [vmem:[#allocation7 + $0xa4] sm:$0xf]
        %v1990 = vld [vmem:[#allocation7 + $0xa8] sm:$0xf]
        %v1991 = vld [vmem:[#allocation7 + $0xac] sm:$0xf]
        %v1992 = vld [vmem:[#allocation7 + $0xb0] sm:$0xf]
        %v1993 = vld [vmem:[#allocation7 + $0xb4] sm:$0xf]
        %v1994 = vld [vmem:[#allocation7 + $0xb8] sm:$0xf]
        %v1995 = vld [vmem:[#allocation7 + $0xbc] sm:$0xf]
        %v1996 = vld [vmem:[#allocation7 + $0xc0] sm:$0xf]
        %v1997 = vld [vmem:[#allocation7 + $0xc4] sm:$0xf]
        %v1998 = vld [vmem:[#allocation7 + $0xc8] sm:$0xf]
        %v1999 = vld [vmem:[#allocation7 + $0xcc] sm:$0xf]
        %v2000 = vld [vmem:[#allocation7 + $0xd0] sm:$0xf]
        %v2001 = vld [vmem:[#allocation7 + $0xd4] sm:$0xf]
        %v2002 = vld [vmem:[#allocation7 + $0xd8] sm:$0xf]
        %v2003 = vld [vmem:[#allocation7 + $0xdc] sm:$0xf]
        %v2004 = vld [vmem:[#allocation7 + $0xe0] sm:$0xf]
        %v2005 = vld [vmem:[#allocation7 + $0xe4] sm:$0xf]
        %v2006 = vld [vmem:[#allocation7 + $0xe8] sm:$0xf]
        %v2007 = vld [vmem:[#allocation7 + $0xec] sm:$0xf]
        %v2008 = vld [vmem:[#allocation7 + $0xf0] sm:$0xf]
        %v2009 = vld [vmem:[#allocation7 + $0xf4] sm:$0xf]
        %v2010 = vld [vmem:[#allocation7 + $0xf8] sm:$0xf]
        %v2011 = vld [vmem:[#allocation7 + $0xfc] sm:$0xf]
        %v2012 = vld [vmem:[%s4] sm:$0x1]
        %v2014 = vlaneseq
        %v2015 = vshrl.u32 %v2014, 7
        %v2016 = vsub.s32 0, %v2015
        %v2017 = vrot.slane %v2012, %v2016
        %v2083 = vunpack.c.l.b16 %v1948
        %v2084 = vunpack.c.l.b16 %v1949
        %v2085 = vunpack.c.l.b16 %v1950
        %v2086 = vunpack.c.l.b16 %v1951
        %v2087 = vunpack.c.l.b16 %v1952
        %v2088 = vunpack.c.l.b16 %v1953
        %v2089 = vunpack.c.l.b16 %v1954
        %v2090 = vunpack.c.l.b16 %v1955
        %v2091 = vunpack.c.l.b16 %v1956
        %v2092 = vunpack.c.l.b16 %v1957
        %v2093 = vunpack.c.l.b16 %v1958
        %v2094 = vunpack.c.l.b16 %v1959
        %v2095 = vunpack.c.l.b16 %v1960
        %v2096 = vunpack.c.l.b16 %v1961
        %v2097 = vunpack.c.l.b16 %v1962
        %v2098 = vunpack.c.l.b16 %v1963
        %v2099 = vunpack.c.l.b16 %v1964
        %v2100 = vunpack.c.l.b16 %v1965
        %v2101 = vunpack.c.l.b16 %v1966
        %v2102 = vunpack.c.l.b16 %v1967
        %v2103 = vunpack.c.l.b16 %v1968
        %v2104 = vunpack.c.l.b16 %v1969
        %v2105 = vunpack.c.l.b16 %v1970
        %v2106 = vunpack.c.l.b16 %v1971
        %v2107 = vunpack.c.l.b16 %v1972
        %v2108 = vunpack.c.l.b16 %v1973
        %v2109 = vunpack.c.l.b16 %v1974
        %v2110 = vunpack.c.l.b16 %v1975
        %v2111 = vunpack.c.l.b16 %v1976
        %v2112 = vunpack.c.l.b16 %v1977
        %v2113 = vunpack.c.l.b16 %v1978
        %v2114 = vunpack.c.l.b16 %v1979
        %v2115 = vunpack.c.l.b16 %v1980
        %v2116 = vunpack.c.l.b16 %v1981
        %v2117 = vunpack.c.l.b16 %v1982
        %v2118 = vunpack.c.l.b16 %v1983
        %v2119 = vunpack.c.l.b16 %v1984
        %v2120 = vunpack.c.l.b16 %v1985
        %v2121 = vunpack.c.l.b16 %v1986
        %v2122 = vunpack.c.l.b16 %v1987
        %v2123 = vunpack.c.l.b16 %v1988
        %v2124 = vunpack.c.l.b16 %v1989
        %v2125 = vunpack.c.l.b16 %v1990
        %v2126 = vunpack.c.l.b16 %v1991
        %v2127 = vunpack.c.l.b16 %v1992
        %v2128 = vunpack.c.l.b16 %v1993
        %v2129 = vunpack.c.l.b16 %v1994
        %v2130 = vunpack.c.l.b16 %v1995
        %v2131 = vunpack.c.l.b16 %v1996
        %v2132 = vunpack.c.l.b16 %v1997
        %v2133 = vunpack.c.l.b16 %v1998
        %v2134 = vunpack.c.l.b16 %v1999
        %v2135 = vunpack.c.l.b16 %v2000
        %v2136 = vunpack.c.l.b16 %v2001
        %v2137 = vunpack.c.l.b16 %v2002
        %v2138 = vunpack.c.l.b16 %v2003
        %v2139 = vunpack.c.l.b16 %v2004
        %v2140 = vunpack.c.l.b16 %v2005
        %v2141 = vunpack.c.l.b16 %v2006
        %v2142 = vunpack.c.l.b16 %v2007
        %v2143 = vunpack.c.l.b16 %v2008
        %v2144 = vunpack.c.l.b16 %v2009
        %v2145 = vunpack.c.l.b16 %v2010
        %v2146 = vunpack.c.l.b16 %v2011
        %v2147 = vpack.c.b16 %v2084, %v2083
        %v2148 = vpack.c.b16 %v2086, %v2085
        %v2149 = vpack.c.b16 %v2088, %v2087
        %v2150 = vpack.c.b16 %v2090, %v2089
        %v2151 = vpack.c.b16 %v2092, %v2091
        %v2152 = vpack.c.b16 %v2094, %v2093
        %v2153 = vpack.c.b16 %v2096, %v2095
        %v2154 = vpack.c.b16 %v2098, %v2097
        %v2155 = vpack.c.b16 %v2100, %v2099
        %v2156 = vpack.c.b16 %v2102, %v2101
        %v2157 = vpack.c.b16 %v2104, %v2103
        %v2158 = vpack.c.b16 %v2106, %v2105
        %v2159 = vpack.c.b16 %v2108, %v2107
        %v2160 = vpack.c.b16 %v2110, %v2109
        %v2161 = vpack.c.b16 %v2112, %v2111
        %v2162 = vpack.c.b16 %v2114, %v2113
        %v2163 = vpack.c.b16 %v2116, %v2115
        %v2164 = vpack.c.b16 %v2118, %v2117
        %v2165 = vpack.c.b16 %v2120, %v2119
        %v2166 = vpack.c.b16 %v2122, %v2121
        %v2167 = vpack.c.b16 %v2124, %v2123
        %v2168 = vpack.c.b16 %v2126, %v2125
        %v2169 = vpack.c.b16 %v2128, %v2127
        %v2170 = vpack.c.b16 %v2130, %v2129
        %v2171 = vpack.c.b16 %v2132, %v2131
        %v2172 = vpack.c.b16 %v2134, %v2133
        %v2173 = vpack.c.b16 %v2136, %v2135
        %v2174 = vpack.c.b16 %v2138, %v2137
        %v2175 = vpack.c.b16 %v2140, %v2139
        %v2176 = vpack.c.b16 %v2142, %v2141
        %v2177 = vpack.c.b16 %v2144, %v2143
        %v2178 = vpack.c.b16 %v2146, %v2145
        %2211 = vmatprep.subr.bf16.mxu0 0
        %2212 = vmatpush1.bf16.msra.mxu0 %v2147
        %2213 = vmatprep.subr.bf16.mxu0 0
        %2214 = vmatpush1.bf16.msra.mxu0 %v2148
        %2215 = vmatprep.subr.bf16.mxu0 0
        %2216 = vmatpush1.bf16.msra.mxu0 %v2149
        %2217 = vmatprep.subr.bf16.mxu0 0
        %2218 = vmatpush1.bf16.msra.mxu0 %v2150
        %2219 = vmatprep.subr.bf16.mxu0 0
        %2220 = vmatpush1.bf16.msra.mxu0 %v2151
        %2221 = vmatprep.subr.bf16.mxu0 0
        %2222 = vmatpush1.bf16.msra.mxu0 %v2152
        %2223 = vmatprep.subr.bf16.mxu0 0
        %2224 = vmatpush1.bf16.msra.mxu0 %v2153
        %2225 = vmatprep.subr.bf16.mxu0 0
        %2226 = vmatpush1.bf16.msra.mxu0 %v2154
        %2227 = vmatprep.subr.bf16.mxu0 0
        %2228 = vmatpush1.bf16.msra.mxu0 %v2155
        %2229 = vmatprep.subr.bf16.mxu0 0
        %2230 = vmatpush1.bf16.msra.mxu0 %v2156
        %2231 = vmatprep.subr.bf16.mxu0 0
        %2232 = vmatpush1.bf16.msra.mxu0 %v2157
        %2233 = vmatprep.subr.bf16.mxu0 0
        %2234 = vmatpush1.bf16.msra.mxu0 %v2158
        %2235 = vmatprep.subr.bf16.mxu0 0
        %2236 = vmatpush1.bf16.msra.mxu0 %v2159
        %2237 = vmatprep.subr.bf16.mxu0 0
        %2238 = vmatpush1.bf16.msra.mxu0 %v2160
        %2239 = vmatprep.subr.bf16.mxu0 0
        %2240 = vmatpush1.bf16.msra.mxu0 %v2161
        %2241 = vmatprep.subr.bf16.mxu0 0
        %2242 = vmatpush1.bf16.msra.mxu0 %v2162
        %2243 = vmatprep.mubr.bf16.mxu0 %v1945
        %2244 = vmatmul.mubr.bf16.gmra.mrb[0].mxu0 %v1944
        %v2245 = vpop.f32.mrb[0].mxu0
        %v2246 = vadd.f32 %v2017, %v2245
        %v2247 = vpop.f32.mrb[0].mxu0
        %v2248 = vpop.f32.mrb[0].mxu0
        %v2249 = vadd.f32 %v2017, %v2248
        %v2250 = vpop.f32.mrb[0].mxu0
        %2251 = vdwg.mxu0
        %2252 = vmatprep.subr.bf16.mxu0 0
        %2253 = vmatpush1.bf16.msra.mxu0 %v2163
        %2254 = vmatprep.subr.bf16.mxu0 0
        %2255 = vmatpush1.bf16.msra.mxu0 %v2164
        %2256 = vmatprep.subr.bf16.mxu0 0
        %2257 = vmatpush1.bf16.msra.mxu0 %v2165
        %2258 = vmatprep.subr.bf16.mxu0 0
        %2259 = vmatpush1.bf16.msra.mxu0 %v2166
        %2260 = vmatprep.subr.bf16.mxu0 0
        %2261 = vmatpush1.bf16.msra.mxu0 %v2167
        %2262 = vmatprep.subr.bf16.mxu0 0
        %2263 = vmatpush1.bf16.msra.mxu0 %v2168
        %2264 = vmatprep.subr.bf16.mxu0 0
        %2265 = vmatpush1.bf16.msra.mxu0 %v2169
        %2266 = vmatprep.subr.bf16.mxu0 0
        %2267 = vmatpush1.bf16.msra.mxu0 %v2170
        %2268 = vmatprep.subr.bf16.mxu0 0
        %2269 = vmatpush1.bf16.msra.mxu0 %v2171
        %2270 = vmatprep.subr.bf16.mxu0 0
        %2271 = vmatpush1.bf16.msra.mxu0 %v2172
        %2272 = vmatprep.subr.bf16.mxu0 0
        %2273 = vmatpush1.bf16.msra.mxu0 %v2173
        %2274 = vmatprep.subr.bf16.mxu0 0
        %2275 = vmatpush1.bf16.msra.mxu0 %v2174
        %2276 = vmatprep.subr.bf16.mxu0 0
        %2277 = vmatpush1.bf16.msra.mxu0 %v2175
        %2278 = vmatprep.subr.bf16.mxu0 0
        %2279 = vmatpush1.bf16.msra.mxu0 %v2176
        %2280 = vmatprep.subr.bf16.mxu0 0
        %2281 = vmatpush1.bf16.msra.mxu0 %v2177
        %2282 = vmatprep.subr.bf16.mxu0 0
        %2283 = vmatpush1.bf16.msra.mxu0 %v2178
        %2284 = vmatprep.mubr.bf16.mxu0 %v1947
        %2285 = vmatmul.mubr.bf16.gmra.mrb[0].mxu0 %v1946
        %v2286 = vpop.f32.mrb[0].mxu0
        %v2287 = vadd.f32 %v2246, %v2286
        %v2288 = vpop.f32.mrb[0].mxu0
        %v2289 = vpop.f32.mrb[0].mxu0
        %v2290 = vadd.f32 %v2249, %v2289
        %v2291 = vpop.f32.mrb[0].mxu0
        %2292 = vdwg.mxu0
        %v2293 = vmax.f32 %v2287, 0.0
        %v2294 = vmax.f32 %v2290, 0.0
        %v2295 = vpack.c.bf16 %v2294, %v2293
        %v2296 = vld [vmem:[#allocation9] sm:$0xf]
        %v2297 = vld [vmem:[#allocation9 + $0x4] sm:$0xf]
        %v2298 = vld [vmem:[#allocation9 + $0x8] sm:$0xf]
        %v2299 = vld [vmem:[#allocation9 + $0xc] sm:$0xf]
        %v2300 = vld [vmem:[#allocation9 + $0x10] sm:$0xf]
        %v2301 = vld [vmem:[#allocation9 + $0x14] sm:$0xf]
        %v2302 = vld [vmem:[#allocation9 + $0x18] sm:$0xf]
        %v2303 = vld [vmem:[#allocation9 + $0x1c] sm:$0xf]
        %v2304 = vld [vmem:[#allocation9 + $0x20] sm:$0xf]
        %v2305 = vld [vmem:[#allocation9 + $0x24] sm:$0xf]
        %v2306 = vld [vmem:[#allocation9 + $0x28] sm:$0xf]
        %v2307 = vld [vmem:[#allocation9 + $0x2c] sm:$0xf]
        %v2308 = vld [vmem:[#allocation9 + $0x30] sm:$0xf]
        %v2309 = vld [vmem:[#allocation9 + $0x34] sm:$0xf]
        %v2310 = vld [vmem:[#allocation9 + $0x38] sm:$0xf]
        %v2311 = vld [vmem:[#allocation9 + $0x3c] sm:$0xf]
        %v2312 = vld [vmem:[%s6] sm:$0x1]
        %v2314 = vlaneseq
        %v2315 = vshrl.u32 %v2314, 7
        %v2316 = vsub.s32 0, %v2315
        %v2317 = vrot.slane %v2312, %v2316
        %v2335 = vunpack.c.l.b16 %v2296
        %v2336 = vunpack.c.l.b16 %v2297
        %v2337 = vunpack.c.l.b16 %v2298
        %v2338 = vunpack.c.l.b16 %v2299
        %v2339 = vunpack.c.l.b16 %v2300
        %v2340 = vunpack.c.l.b16 %v2301
        %v2341 = vunpack.c.l.b16 %v2302
        %v2342 = vunpack.c.l.b16 %v2303
        %v2343 = vunpack.c.l.b16 %v2304
        %v2344 = vunpack.c.l.b16 %v2305
        %v2345 = vunpack.c.l.b16 %v2306
        %v2346 = vunpack.c.l.b16 %v2307
        %v2347 = vunpack.c.l.b16 %v2308
        %v2348 = vunpack.c.l.b16 %v2309
        %v2349 = vunpack.c.l.b16 %v2310
        %v2350 = vunpack.c.l.b16 %v2311
        %v2351 = vpack.c.b16 %v2336, %v2335
        %v2352 = vpack.c.b16 %v2338, %v2337
        %v2353 = vpack.c.b16 %v2340, %v2339
        %v2354 = vpack.c.b16 %v2342, %v2341
        %v2355 = vpack.c.b16 %v2344, %v2343
        %v2356 = vpack.c.b16 %v2346, %v2345
        %v2357 = vpack.c.b16 %v2348, %v2347
        %v2358 = vpack.c.b16 %v2350, %v2349
        %2367 = vmatprep.subr.bf16.mxu0 0
        %2368 = vmatpush1.bf16.msra.mxu0 %v2351
        %2369 = vmatprep.subr.bf16.mxu0 0
        %2370 = vmatpush1.bf16.msra.mxu0 %v2352
        %2371 = vmatprep.subr.bf16.mxu0 0
        %2372 = vmatpush1.bf16.msra.mxu0 %v2353
        %2373 = vmatprep.subr.bf16.mxu0 0
        %2374 = vmatpush1.bf16.msra.mxu0 %v2354
        %2375 = vmatprep.subr.bf16.mxu0 0
        %2376 = vmatpush1.bf16.msra.mxu0 %v2355
        %2377 = vmatprep.subr.bf16.mxu0 0
        %2378 = vmatpush1.bf16.msra.mxu0 %v2356
        %2379 = vmatprep.subr.bf16.mxu0 0
        %2380 = vmatpush1.bf16.msra.mxu0 %v2357
        %2381 = vmatprep.subr.bf16.mxu0 0
        %2382 = vmatpush1.bf16.msra.mxu0 %v2358
        %2383 = vmatprep.subr.bf16.mxu0 0
        %2384 = vmatpush1.bf16.msra.mxu0 0
        %2385 = vmatprep.subr.bf16.mxu0 0
        %2386 = vmatpush1.bf16.msra.mxu0 0
        %2387 = vmatprep.subr.bf16.mxu0 0
        %2388 = vmatpush1.bf16.msra.mxu0 0
        %2389 = vmatprep.subr.bf16.mxu0 0
        %2390 = vmatpush1.bf16.msra.mxu0 0
        %2391 = vmatprep.subr.bf16.mxu0 0
        %2392 = vmatpush1.bf16.msra.mxu0 0
        %2393 = vmatprep.subr.bf16.mxu0 0
        %2394 = vmatpush1.bf16.msra.mxu0 0
        %2395 = vmatprep.subr.bf16.mxu0 0
        %2396 = vmatpush1.bf16.msra.mxu0 0
        %2397 = vmatprep.subr.bf16.mxu0 0
        %2398 = vmatpush1.bf16.msra.mxu0 0
        %2399 = vmatprep.mubr.bf16.mxu0 0
        %2400 = vmatmul.mubr.bf16.gmra.mrb[0].mxu0 %v2295
        %v2401 = vpop.f32.mrb[0].mxu0
        %v2402 = vadd.f32 %v2317, %v2401
        %v2403 = vpop.f32.mrb[0].mxu0
        %v2404 = vpop.f32.mrb[0].mxu0
        %v2405 = vadd.f32 %v2317, %v2404
        %v2406 = vpop.f32.mrb[0].mxu0
        %2407 = vdwg.mxu0
        %2408 = vst [vmem:[%s356] sm:$0xff] %v2402
        %2409 = vst [vmem:[%s356 + $0x8] sm:$0xff] %v2405
        %s2410 = sand.u32 %s183, 1
        %s2411 = sand.u32 %s183, 1
        %s2412 = smul.addr %s2411, 16
        %s2413 = scalar_lea.vmem [#allocation10], %s2412
        // Predicated region
        $region69: #{encoder_ln_forward.1} parent=47 // pred_check
          %p2414 = pneg %p193
        $region70: #{encoder_ln_forward.1} parent=47 // pred_check_branch
          %2416 = sbr.rel (%p2414) target = $region72
        $region71: #{encoder_ln_forward.1} parent=47 // pred_region
          %s2417 = smul.u32 2, %s23
          %s2418 = ssub.s32 3, %s2417
          %p2419 = scmp.lt.s32.totalorder %s2418, 2
          %s2420 = scalar_select %p2419, %s2418, 2
          %s2421 = smul.u32 128, %s2420
          %p2422 = scmp.ne.s32.totalorder 0, %s2421
          %s2423 = smul.addr %s2417, 8
          %s2424 = scalar_lea.vmem %s7, %s2423
          // Predicated region
          $region73: #{encoder_ln_forward.1} parent=71 // pred_check
            %p2425 = pneg %p2422
          $region74: #{encoder_ln_forward.1} parent=71 // pred_check_branch
            %2427 = sbr.rel (%p2425) target = $region76
          $region75: #{encoder_ln_forward.1} parent=71 // pred_region
            // Predicated region
            $region77: #{encoder_ln_forward.1} parent=75 // pred_check
              _
            $region78: #{encoder_ln_forward.1} parent=75 // pred_check_branch
              %2429 = sbr.rel (0) target = $region80
            $region79: #{encoder_ln_forward.1} parent=75 // pred_region
              // Predicated region
              $region99: #{encoder_ln_forward.1} parent=79 // pred_check
                _
              $region100: #{encoder_ln_forward.1} parent=79 // pred_check_branch
                %2480 = sbr.rel (0) target = $region102
              $region101: #{encoder_ln_forward.1} parent=79 // pred_region
                %s2481 = sshrl.u32 %s2420, 1
                // While loop
                $region103: #{encoder_ln_forward.1} parent=101 // loop_pre_header
                  _
                $region104: #{encoder_ln_forward.1} parent=101 // loop_header
                  %s2483 = sphi 0, %s2485
                  %p2484 = scmp.ge.s32.totalorder %s2483, %s2481
                  %s2488 = sphi 0, %s2497
                  %s2489 = sphi %s2413, %s2500
                  %s2490 = sphi %s2424, %s2501
                $region105: #{encoder_ln_forward.1} parent=101 // loop_header_branch
                  %2487 = sbr.rel (%p2484) target = $region109
                $region106: #{encoder_ln_forward.1} parent=101 // loop_body
                  %v2491 = vld [vmem:[%s2489] sm:$0xff]
                  %2492 = vst [vmem:[%s2490] sm:$0xff] %v2491
                  %v2493 = vld [vmem:[%s2489 + $0x8] sm:$0xff]
                  %2494 = vst [vmem:[%s2490 + $0x8] sm:$0xff] %v2493
                  %s2495 = sadd.s32 1, %s2488
                  %p2496 = scmp.ge.s32.totalorder %s2495, %s2481
                  %s2497 = scalar_select %p2496, 0, %s2495
                  %s2498 = smul.u32 %s2497, 16
                  %s2499 = smul.u32 %s2497, 16
                  %s2500 = scalar_lea.vmem %s2413, %s2498 [#allocation10]
                  %s2501 = scalar_lea.vmem %s2424, %s2499
                $region107: #{encoder_ln_forward.1} parent=101 // loop_footer
                  %s2485 = sadd.s32 %s2483, 1
                $region108: #{encoder_ln_forward.1} parent=101 // loop_footer_branch
                  %2482 = sbr.rel target = $region104
                $region109: #{encoder_ln_forward.1} parent=101 // loop_exit
                  _
                %s2502 = sshrl.u32 %s2420, 1
                %s2503 = sand.u32 %s2420, 1
                %s2504 = smul.u32 %s2502, 2
                %s2505 = smul.u32 8, %s2504
                %s2506 = scalar_lea.vmem %s2413, %s2505 [#allocation10]
                %s2507 = smul.u32 8, %s2504
                %s2508 = scalar_lea.vmem %s2424, %s2507
                // While loop
                $region110: #{encoder_ln_forward.1} parent=101 // loop_pre_header
                  _
                $region111: #{encoder_ln_forward.1} parent=101 // loop_header
                  %s2510 = sphi 0, %s2512
                  %p2511 = scmp.ge.s32.totalorder %s2510, %s2503
                  %s2515 = sphi 0, %s2522
                  %s2516 = sphi %s2506, %s2525
                  %s2517 = sphi %s2508, %s2526
                $region112: #{encoder_ln_forward.1} parent=101 // loop_header_branch
                  %2514 = sbr.rel (%p2511) target = $region116
                $region113: #{encoder_ln_forward.1} parent=101 // loop_body
                  %v2518 = vld [vmem:[%s2516] sm:$0xff]
                  %2519 = vst [vmem:[%s2517] sm:$0xff] %v2518
                  %s2520 = sadd.s32 1, %s2515
                  %p2521 = scmp.ge.s32.totalorder %s2520, %s2503
                  %s2522 = scalar_select %p2521, 0, %s2520
                  %s2523 = smul.u32 %s2522, 8
                  %s2524 = smul.u32 %s2522, 8
                  %s2525 = scalar_lea.vmem %s2506, %s2523 [#allocation10]
                  %s2526 = scalar_lea.vmem %s2508, %s2524
                $region114: #{encoder_ln_forward.1} parent=101 // loop_footer
                  %s2512 = sadd.s32 %s2510, 1
                $region115: #{encoder_ln_forward.1} parent=101 // loop_footer_branch
                  %2509 = sbr.rel target = $region111
                $region116: #{encoder_ln_forward.1} parent=101 // loop_exit
                  _
              $region102: #{encoder_ln_forward.1} parent=79 // pred_fallthru
                _
              // Predicated region
              $region117: #{encoder_ln_forward.1} parent=79 // pred_check
                _
              $region118: #{encoder_ln_forward.1} parent=79 // pred_check_branch
                %2528 = sbr.rel target = $region120
              $region119: #{encoder_ln_forward.1} parent=79 // pred_region
                _
              $region120: #{encoder_ln_forward.1} parent=79 // pred_fallthru
                _
            $region80: #{encoder_ln_forward.1} parent=75 // pred_fallthru
              _
            // Predicated region
            $region81: #{encoder_ln_forward.1} parent=75 // pred_check
              _
            $region82: #{encoder_ln_forward.1} parent=75 // pred_check_branch
              %2431 = sbr.rel target = $region84
            $region83: #{encoder_ln_forward.1} parent=75 // pred_region
              %s2433 = sshrl.u32 %s2420, 1
              // While loop
              $region85: #{encoder_ln_forward.1} parent=83 // loop_pre_header
                _
              $region86: #{encoder_ln_forward.1} parent=83 // loop_header
                %s2435 = sphi 0, %s2437
                %p2436 = scmp.ge.s32.totalorder %s2435, %s2433
                %s2440 = sphi 0, %s2449
                %s2441 = sphi %s2413, %s2452
                %s2442 = sphi %s2424, %s2453
              $region87: #{encoder_ln_forward.1} parent=83 // loop_header_branch
                %2439 = sbr.rel (%p2436) target = $region91
              $region88: #{encoder_ln_forward.1} parent=83 // loop_body
                %v2443 = vld [vmem:[%s2441] sm:$0xff]
                %2444 = vst [vmem:[%s2442] sm:$0xff] %v2443
                %v2445 = vld [vmem:[%s2441 + $0x8] sm:$0xff]
                %2446 = vst [vmem:[%s2442 + $0x8] sm:$0xff] %v2445
                %s2447 = sadd.s32 1, %s2440
                %p2448 = scmp.ge.s32.totalorder %s2447, %s2433
                %s2449 = scalar_select %p2448, 0, %s2447
                %s2450 = smul.u32 %s2449, 16
                %s2451 = smul.u32 %s2449, 16
                %s2452 = scalar_lea.vmem %s2413, %s2450 [#allocation10]
                %s2453 = scalar_lea.vmem %s2424, %s2451
              $region89: #{encoder_ln_forward.1} parent=83 // loop_footer
                %s2437 = sadd.s32 %s2435, 1
              $region90: #{encoder_ln_forward.1} parent=83 // loop_footer_branch
                %2434 = sbr.rel target = $region86
              $region91: #{encoder_ln_forward.1} parent=83 // loop_exit
                _
              %s2454 = sshrl.u32 %s2420, 1
              %s2455 = sand.u32 %s2420, 1
              %s2456 = smul.u32 %s2454, 2
              %s2457 = smul.u32 8, %s2456
              %s2458 = scalar_lea.vmem %s2413, %s2457 [#allocation10]
              %s2459 = smul.u32 8, %s2456
              %s2460 = scalar_lea.vmem %s2424, %s2459
              // While loop
              $region92: #{encoder_ln_forward.1} parent=83 // loop_pre_header
                _
              $region93: #{encoder_ln_forward.1} parent=83 // loop_header
                %s2462 = sphi 0, %s2464
                %p2463 = scmp.ge.s32.totalorder %s2462, %s2455
                %s2467 = sphi 0, %s2474
                %s2468 = sphi %s2458, %s2477
                %s2469 = sphi %s2460, %s2478
              $region94: #{encoder_ln_forward.1} parent=83 // loop_header_branch
                %2466 = sbr.rel (%p2463) target = $region98
              $region95: #{encoder_ln_forward.1} parent=83 // loop_body
                %v2470 = vld [vmem:[%s2468] sm:$0xff]
                %2471 = vst [vmem:[%s2469] sm:$0xff] %v2470
                %s2472 = sadd.s32 1, %s2467
                %p2473 = scmp.ge.s32.totalorder %s2472, %s2455
                %s2474 = scalar_select %p2473, 0, %s2472
                %s2475 = smul.u32 %s2474, 8
                %s2476 = smul.u32 %s2474, 8
                %s2477 = scalar_lea.vmem %s2458, %s2475 [#allocation10]
                %s2478 = scalar_lea.vmem %s2460, %s2476
              $region96: #{encoder_ln_forward.1} parent=83 // loop_footer
                %s2464 = sadd.s32 %s2462, 1
              $region97: #{encoder_ln_forward.1} parent=83 // loop_footer_branch
                %2461 = sbr.rel target = $region93
              $region98: #{encoder_ln_forward.1} parent=83 // loop_exit
                _
            $region84: #{encoder_ln_forward.1} parent=75 // pred_fallthru
              _
          $region76: #{encoder_ln_forward.1} parent=71 // pred_fallthru
            _
          %2529 = vnop
        $region72: #{encoder_ln_forward.1} parent=47 // pred_fallthru
          _
      $region48: #{encoder_ln_forward.1} parent=5 // pred_fallthru
        _
      %p2530 = scmp.le.s32.totalorder 2, %s18
      // Predicated region
      $region121: #{encoder_ln_forward.1} parent=5 // pred_check
        %p2531 = pneg %p2530
      $region122: #{encoder_ln_forward.1} parent=5 // pred_check_branch
        %2533 = sbr.rel (%p2531) target = $region124
      $region123: #{encoder_ln_forward.1} parent=5 // pred_region
        %s2534 = ssub.s32 %s18, 2
        // Predicated region
        $region125: #{encoder_ln_forward.1} parent=123 // pred_check
          %p2535 = pneg %p199
        $region126: #{encoder_ln_forward.1} parent=123 // pred_check_branch
          %2537 = sbr.rel (%p2535) target = $region128
        $region127: #{encoder_ln_forward.1} parent=123 // pred_region
          %s2538 = sand.u32 %s184, 1
          %s2539 = sand.u32 %s184, 1
          %s2540 = smul.addr %s2539, 16
          %s2541 = scalar_lea.vmem [#allocation10], %s2540
        $region128: #{encoder_ln_forward.1} parent=123 // pred_fallthru
          _
      $region124: #{encoder_ln_forward.1} parent=5 // pred_fallthru
        _
    $region6: #{encoder_ln_forward.1} parent=1 // loop_footer
      %s22 = sadd.s32 1, %s18
    $region7: #{encoder_ln_forward.1} parent=1 // loop_footer_branch
      %17 = sbr.rel target = $region3
    $region8: #{encoder_ln_forward.1} parent=1 // loop_exit
      _
    %2542 = vsyncpa [#allocation3], 1
    %s2543 = scalar_lea.sflag [#allocation3], 1
    %2544 = vsyncpa %s2543, 1
    %2545 = vsyncpa [#allocation5], 1
    %2546 = vsyncpa [#allocation8], 1

</llo_original>
